<compile_context>
chip_gen: v7x
topology: tpu7x:2x2x1
jax: 0.10.0
libtpu: 0.0.40
codegen_flags: <defaults>
</compile_context>

<pallas_src>
import functools

import jax
import jax.numpy as jnp
import numpy as np
from jax import lax
from jax.experimental import pallas as pl
from jax.experimental.pallas import tpu as pltpu

EPS = 1e-5    # InstanceNorm2d default eps
LANE = 128    # lane-aligned interior offset inside the zero-haloed scratch


def _bilinear_matrix(n_in, n_out):
    """Interpolation matrix for nn.Upsample(scale_factor=2, mode='bilinear',
    align_corners=True) along one axis: out = U @ in, U shape (n_out, n_in)."""
    U = np.zeros((n_out, n_in), dtype=np.float32)
    for i in range(n_out):
        src = i * (n_in - 1) / (n_out - 1) if n_out > 1 else 0.0
        i0 = min(int(np.floor(src)), n_in - 1)
        i1 = min(i0 + 1, n_in - 1)
        frac = src - i0
        U[i, i0] += 1.0 - frac
        U[i, i1] += frac
    return U


def _upsample_place_matrix(h1, w1, h2, w2):
    """(H2*W2, H1*W1) matrix combining bilinear 2x upsample (align_corners=True)
    with F.pad placement (handles both zero-padding and cropping)."""
    hup, wup = 2 * h1, 2 * w1
    offy = (h2 - hup) // 2
    offx = (w2 - wup) // 2
    Uh = _bilinear_matrix(h1, hup)   # (hup, h1)
    Uw = _bilinear_matrix(w1, wup)   # (wup, w1)
    M = np.zeros((h2 * w2, h1 * w1), dtype=np.float32)
    for y in range(h2):
        yu = y - offy
        if 0 <= yu < hup:
            for x in range(w2):
                xu = x - offx
                if 0 <= xu < wup:
                    M[y * w2 + x, :] = np.kron(Uh[yu], Uw[xu])
    return M


def _num_batch_blocks(batch):
    """v7x has 2 TensorCores per chip (megacore) -> give each a batch block.
    Single-TC chips (v5e / v6e) prefer one big step (per-step overhead
    dominates at these sizes)."""
    try:
        kind = jax.devices()[0].device_kind.lower()
    except Exception:
        return 1
    n_tc = 2 if "v7" in kind else 1
    if n_tc > 1 and batch % n_tc == 0:
        return n_tc
    return 1


def _up_kernel(x1_ref, x2_ref, mask_ref, mt_ref,
               w1_ref, b1_ref, w2_ref, b2_ref,
               out_ref, xpad1_ref, xpad2_ref, col1_ref, col2_ref,
               *, bt, c1, c2, c_mid, c_out, n1, n, w, mxu_dtype):
    c_in = c1 + c2
    halo = w + 1                       # max |lane shift| for a 3x3 conv, pad=1
    off = LANE                         # 128-lane-aligned interior offset

    # Column masks for taps that cross a row edge in the flattened layout.
    not_left = mask_ref[0:1, :]        # (1, n): 0 where x == 0
    not_right = mask_ref[1:2, :]       # (1, n): 0 where x == W-1

    # Zero ONLY the halo strips (done every step so the kernel stays correct
    # when the batch grid axis is sharded across TensorCores).
    for b in range(bt):
        xpad1_ref[b, :, off - halo:off] = jnp.zeros((c_in, halo), jnp.float32)
        xpad1_ref[b, :, off + n:off + n + halo] = jnp.zeros((c_in, halo), jnp.float32)
        xpad2_ref[b, :, off - halo:off] = jnp.zeros((c_mid, halo), jnp.float32)
        xpad2_ref[b, :, off + n:off + n + halo] = jnp.zeros((c_mid, halo), jnp.float32)

    # Bilinear upsample + F.pad (incl. crop) for the WHOLE batch block:
    # one matmul against the precomputed (N1, N) interpolation/placement matrix.
    x1_all = x1_ref[...].reshape(bt * c1, n1).astype(mxu_dtype)     # (Bt*C1, N1)
    up_all = jnp.dot(x1_all, mt_ref[...],
                     preferred_element_type=jnp.float32)            # (Bt*C1, N)

    # torch.cat([x2, pad(up(x1))], dim=1): one aligned (C_in, N) store per image.
    for b in range(bt):
        cat = jnp.concatenate(
            [x2_ref[b].astype(jnp.float32), up_all[b * c1:(b + 1) * c1, :]], axis=0)
        xpad1_ref[b, :, off:off + n] = cat

    def build_im2col(xpad_ref, col_ref, cin):
        # Stack the 9 masked, lane-shifted planes of every image in the block
        # into (9*cin, bt*n); batch lives on the lane axis.
        for b in range(bt):
            for t in range(9):
                dy, dx = divmod(t, 3)
                start = off + (dy - 1) * w + (dx - 1)
                plane = xpad_ref[b, :, start:start + n]              # (cin, n)
                if dx == 0:
                    plane = plane * not_left
                elif dx == 2:
                    plane = plane * not_right
                col_ref[t * cin:(t + 1) * cin, b * n:(b + 1) * n] = plane

    def conv_in_relu(col_ref, w_ref, b_ref):
        # ONE MXU matmul per conv for the whole block (K = 9*cin, f32 accum).
        acc = jnp.dot(w_ref[...], col_ref[...].astype(mxu_dtype),
                      preferred_element_type=jnp.float32)            # (cout, bt*n)
        acc = acc + b_ref[...]                                       # lane-broadcast bias
        outs = []
        for b in range(bt):
            a = acc[:, b * n:(b + 1) * n]
            # InstanceNorm2d (biased variance, single pass, clamped) + ReLU.
            mean = jnp.mean(a, axis=1, keepdims=True)
            var = jnp.mean(a * a, axis=1, keepdims=True) - mean * mean
            var = jnp.maximum(var, 0.0)
            a = (a - mean) * lax.rsqrt(var + EPS)
            outs.append(jnp.maximum(a, 0.0))
        return outs

    build_im2col(xpad1_ref, col1_ref, c_in)
    mids = conv_in_relu(col1_ref, w1_ref, b1_ref)
    for b in range(bt):
        xpad2_ref[b, :, off:off + n] = mids[b]

    build_im2col(xpad2_ref, col2_ref, c_mid)
    outs = conv_in_relu(col2_ref, w2_ref, b2_ref)
    for b in range(bt):
        out_ref[b] = outs[b].astype(out_ref.dtype)


def up_forward(x1, x2, params, *, mxu_dtype=jnp.bfloat16, num_batch_blocks=None):
    """Pallas implementation of Up.forward(x1, x2) (bilinear=True)."""
    w1, b1, w2, b2 = params["w1"], params["b1"], params["w2"], params["b2"]
    B, C1, H1, W1 = x1.shape
    B2, C2, H2, W2 = x2.shape
    assert B == B2
    C_in = C1 + C2
    C_mid, C_out = w1.shape[0], w2.shape[0]
    assert w1.shape == (C_mid, C_in, 3, 3) and w2.shape == (C_out, C_mid, 3, 3)
    N1, N = H1 * W1, H2 * W2
    assert W2 + 1 <= LANE, "row halo must fit inside the 128-lane alignment pad"

    if num_batch_blocks is None:
        num_batch_blocks = _num_batch_blocks(B)
    if B % num_batch_blocks != 0:
        num_batch_blocks = 1
    Bt = B // num_batch_blocks

    # Upsample + pad/crop as a single (N1, N) matrix (negative diff == crop).
    MT = jnp.asarray(_upsample_place_matrix(H1, W1, H2, W2).T).astype(mxu_dtype)

    # Conv weights pre-shaped for the im2col MXU contraction:
    # w_mat[co, (dy*3+dx)*C_in + ci] = w[co, ci, dy, dx].
    w1_mat = (jnp.asarray(w1, jnp.float32).transpose(0, 2, 3, 1)
              .reshape(C_mid, 9 * C_in).astype(mxu_dtype))
    w2_mat = (jnp.asarray(w2, jnp.float32).transpose(0, 2, 3, 1)
              .reshape(C_out, 9 * C_mid).astype(mxu_dtype))
    b1_col = jnp.asarray(b1, jnp.float32).reshape(C_mid, 1)
    b2_col = jnp.asarray(b2, jnp.float32).reshape(C_out, 1)

    # Row-edge masks for the flattened-layout shifted planes.
    col = np.arange(N, dtype=np.int64) % W2
    masks = jnp.asarray(np.stack([(col != 0), (col != W2 - 1)]).astype(np.float32))

    # Lane-dense flattened activations; output reshaped back to NCHW below.
    x1_flat = x1.reshape(B, C1, N1).astype(jnp.float32)
    x2_flat = x2.reshape(B, C2, N).astype(jnp.float32)

    halo = W2 + 1
    pad_w = LANE + ((N + halo + LANE - 1) // LANE) * LANE   # 128-aligned interior

    kernel = functools.partial(_up_kernel, bt=Bt, c1=C1, c2=C2, c_mid=C_mid,
                               c_out=C_out, n1=N1, n=N, w=W2, mxu_dtype=mxu_dtype)

    grid_spec = pltpu.PrefetchScalarGridSpec(
        num_scalar_prefetch=0,
        grid=(num_batch_blocks,),
        in_specs=[
            pl.BlockSpec((Bt, C1, N1), lambda g: (g, 0, 0)),        # x1 (flattened)
            pl.BlockSpec((Bt, C2, N), lambda g: (g, 0, 0)),         # x2 (flattened)
            pl.BlockSpec((2, N), lambda g: (0, 0)),                 # column masks
            pl.BlockSpec((N1, N), lambda g: (0, 0)),                # upsample matrix
            pl.BlockSpec((C_mid, 9 * C_in), lambda g: (0, 0)),      # conv1 weights
            pl.BlockSpec((C_mid, 1), lambda g: (0, 0)),             # conv1 bias
            pl.BlockSpec((C_out, 9 * C_mid), lambda g: (0, 0)),     # conv2 weights
            pl.BlockSpec((C_out, 1), lambda g: (0, 0)),             # conv2 bias
        ],
        out_specs=pl.BlockSpec((Bt, C_out, N), lambda g: (g, 0, 0)),
        scratch_shapes=[
            pltpu.VMEM((Bt, C_in, pad_w), jnp.float32),     # zero-haloed concat buf
            pltpu.VMEM((Bt, C_mid, pad_w), jnp.float32),    # zero-haloed conv1 output
            pltpu.VMEM((9 * C_in, Bt * N), jnp.float32),    # im2col stack, conv1
            pltpu.VMEM((9 * C_mid, Bt * N), jnp.float32),   # im2col stack, conv2
        ],
    )

    op_bytes = jnp.dtype(mxu_dtype).itemsize
    flops = 2 * B * N * (C1 * N1 + 9 * C_in * C_mid + 9 * C_mid * C_out)
    bytes_accessed = (4 * (B * C1 * N1 + B * C2 * N + B * C_out * N)
                      + op_bytes * (N1 * N + 9 * C_in * C_mid + 9 * C_mid * C_out)
                      + 4 * (C_mid + C_out + 2 * N))
    cost = pl.CostEstimate(flops=int(flops),
                           transcendentals=int(B * (C_mid + C_out)),
                           bytes_accessed=int(bytes_accessed))

    out_flat = pl.pallas_call(
        kernel,
        out_shape=jax.ShapeDtypeStruct((B, C_out, N), x1.dtype),
        grid_spec=grid_spec,
        compiler_params=pltpu.CompilerParams(dimension_semantics=("parallel",)),
        cost_estimate=cost,
    )(x1_flat, x2_flat, masks, MT, w1_mat, b1_col, w2_mat, b2_col)

    return out_flat.reshape(B, C_out, H2, W2)


def up_reference(x1, x2, params):
    """Pure-JAX reference matching the PyTorch semantics."""
    w1, b1, w2, b2 = params["w1"], params["b1"], params["w2"], params["b2"]
    _, _, H1, W1 = x1.shape
    _, _, H2, W2 = x2.shape
    Hup, Wup = 2 * H1, 2 * W1
    Uh = jnp.asarray(_bilinear_matrix(H1, Hup))
    Uw = jnp.asarray(_bilinear_matrix(W1, Wup))
    x1u = jnp.einsum("oh,bchw->bcow", Uh, x1)
    x1u = jnp.einsum("pw,bcow->bcop", Uw, x1u)
    diffY, diffX = H2 - Hup, W2 - Wup
    x1p = jnp.pad(x1u, ((0, 0), (0, 0),
                        (diffY // 2, diffY - diffY // 2),
                        (diffX // 2, diffX - diffX // 2)))
    x = jnp.concatenate([x2, x1p], axis=1)

    def conv_in_relu(x, w, b):
        y = lax.conv_general_dilated(x, w, (1, 1), ((1, 1), (1, 1)),
                                     dimension_numbers=("NCHW", "OIHW", "NCHW"))
        y = y + b[None, :, None, None]
        mean = jnp.mean(y, axis=(2, 3), keepdims=True)
        var = jnp.mean((y - mean) ** 2, axis=(2, 3), keepdims=True)
        y = (y - mean) / jnp.sqrt(var + EPS)
        return jnp.maximum(y, 0.0)

    return conv_in_relu(conv_in_relu(x, w1, b1), w2, b2)


if __name__ == "__main__":
    key = jax.random.PRNGKey(0)
    k1, k2, kw1, kb1, kw2, kb2 = jax.random.split(key, 6)

    # Up(in_channels=8, out_channels=4, bilinear=True) -> mid = 4
    B = 2
    in_channels, out_channels = 8, 4
    mid_channels = in_channels // 2
    C1 = in_channels // 2        # decoder feature channels (x1, gets upsampled)
    C2 = in_channels - C1        # skip-connection channels (x2)
    H2 = W2 = 16
    H1 = W1 = 8                  # x1 spatial; upsamples to 16x16

    x1 = jax.random.normal(k1, (B, C1, H1, W1), jnp.float32)
    x2 = jax.random.normal(k2, (B, C2, H2, W2), jnp.float32)
    params = dict(
        w1=0.1 * jax.random.normal(kw1, (mid_channels, in_channels, 3, 3), jnp.float32),
        b1=0.1 * jax.random.normal(kb1, (mid_channels,), jnp.float32),
        w2=0.1 * jax.random.normal(kw2, (out_channels, mid_channels, 3, 3), jnp.float32),
        b2=0.1 * jax.random.normal(kb2, (out_channels,), jnp.float32),
    )

    ref = np.asarray(up_reference(x1, x2, params))

    # 1) f32 MXU operands, auto batch blocking: strict semantic check.
    out_f32 = jax.block_until_ready(up_forward(x1, x2, params, mxu_dtype=jnp.float32))
    assert out_f32.shape == (B, out_channels, H2, W2), out_f32.shape
    if not np.allclose(np.asarray(out_f32), ref, atol=5e-3, rtol=5e-3):
        err = float(np.max(np.abs(np.asarray(out_f32) - ref)))
        raise AssertionError(f"f32 kernel mismatch vs reference, max abs err = {err}")

    # 2) f32, explicit 2-block grid (exercises the megacore / multi-step path).
    out_2blk = jax.block_until_ready(
        up_forward(x1, x2, params, mxu_dtype=jnp.float32, num_batch_blocks=2))
    if not np.allclose(np.asarray(out_2blk), ref, atol=5e-3, rtol=5e-3):
        err = float(np.max(np.abs(np.asarray(out_2blk) - ref)))
        raise AssertionError(f"2-block kernel mismatch vs reference, max abs err = {err}")

    # 3) bf16 MXU operands (f32 accumulation / norm): loose sanity check
    #    (~1% relative error is expected from bf16 rounding of the operands).
    out_bf16 = jax.block_until_ready(up_forward(x1, x2, params, mxu_dtype=jnp.bfloat16))
    if not np.allclose(np.asarray(out_bf16), ref, atol=1e-1, rtol=1e-1):
        err = float(np.max(np.abs(np.asarray(out_bf16) - ref)))
        raise AssertionError(f"bf16 kernel mismatch vs reference, max abs err = {err}")

    print("KERNEL_OK")
</pallas_src>

<mosaic_0001>
module attributes {stable_mosaic.version = 11 : i64} {
  func.func @_up_kernel(%arg0: i32, %arg1: memref<2x4x64xf32, #tpu.memory_space<vmem>>, %arg2: memref<2x4x256xf32, #tpu.memory_space<vmem>>, %arg3: memref<2x256xf32, #tpu.memory_space<vmem>>, %arg4: memref<64x256xf32, #tpu.memory_space<vmem>>, %arg5: memref<4x72xf32, #tpu.memory_space<vmem>>, %arg6: memref<4x1xf32, #tpu.memory_space<vmem>>, %arg7: memref<4x36xf32, #tpu.memory_space<vmem>>, %arg8: memref<4x1xf32, #tpu.memory_space<vmem>>, %arg9: memref<2x4x256xf32, #tpu.memory_space<vmem>>, %arg10: memref<2x8x512xf32, #tpu.memory_space<vmem>>, %arg11: memref<2x4x512xf32, #tpu.memory_space<vmem>>, %arg12: memref<72x512xf32, #tpu.memory_space<vmem>>, %arg13: memref<36x512xf32, #tpu.memory_space<vmem>>) attributes {dimension_semantics = [#tpu.dimension_semantics<parallel>], iteration_bounds = array<i64: 1>, scalar_prefetch = 0 : i64, scratch_operands = 4 : i64, tpu.core_type = #tpu.core_type<tc>, window_params = [{transform_indices = @transform_0, window_bounds = array<i64: 2, 4, 64>}, {transform_indices = @transform_1, window_bounds = array<i64: 2, 4, 256>}, {pipeline_mode = #tpu.pipeline_mode<synchronous>, transform_indices = @transform_2, window_bounds = array<i64: 2, 256>}, {pipeline_mode = #tpu.pipeline_mode<synchronous>, transform_indices = @transform_3, window_bounds = array<i64: 64, 256>}, {pipeline_mode = #tpu.pipeline_mode<synchronous>, transform_indices = @transform_4, window_bounds = array<i64: 4, 72>}, {pipeline_mode = #tpu.pipeline_mode<synchronous>, transform_indices = @transform_5, window_bounds = array<i64: 4, 1>}, {pipeline_mode = #tpu.pipeline_mode<synchronous>, transform_indices = @transform_6, window_bounds = array<i64: 4, 36>}, {pipeline_mode = #tpu.pipeline_mode<synchronous>, transform_indices = @transform_7, window_bounds = array<i64: 4, 1>}, {transform_indices = @transform_8, window_bounds = array<i64: 2, 4, 256>}]} {
    %c0 = arith.constant 0 : index
    %c0_0 = arith.constant 0 : index
    %0 = vector.load %arg3[%c0, %c0_0] : memref<2x256xf32, #tpu.memory_space<vmem>>, vector<1x256xf32>
    %c1 = arith.constant 1 : index
    %c0_1 = arith.constant 0 : index
    %1 = vector.load %arg3[%c1, %c0_1] : memref<2x256xf32, #tpu.memory_space<vmem>>, vector<1x256xf32>
    %cst = arith.constant 0.000000e+00 : f32
    %2 = vector.broadcast %cst : f32 to vector<8x17xf32>
    %c0_2 = arith.constant 0 : index
    %c0_3 = arith.constant 0 : index
    %c111 = arith.constant 111 : index
    %3 = vector.load %arg10[%c0_2, %c0_3, %c111] : memref<2x8x512xf32, #tpu.memory_space<vmem>>, vector<1x8x17xf32>
    %4 = vector.shape_cast %3 : vector<1x8x17xf32> to vector<8x17xf32>
    %5 = vector.shape_cast %2 : vector<8x17xf32> to vector<1x8x17xf32>
    tpu.vector_store %arg10[%c0_2, %c0_3, %c111], %5 {strides = array<i32>} : memref<2x8x512xf32, #tpu.memory_space<vmem>>, vector<1x8x17xf32>,
    %cst_4 = arith.constant 0.000000e+00 : f32
    %6 = vector.broadcast %cst_4 : f32 to vector<8x17xf32>
    %c0_5 = arith.constant 0 : index
    %c0_6 = arith.constant 0 : index
    %c384 = arith.constant 384 : index
    %7 = vector.load %arg10[%c0_5, %c0_6, %c384] : memref<2x8x512xf32, #tpu.memory_space<vmem>>, vector<1x8x17xf32>
    %8 = vector.shape_cast %7 : vector<1x8x17xf32> to vector<8x17xf32>
    %9 = vector.shape_cast %6 : vector<8x17xf32> to vector<1x8x17xf32>
    tpu.vector_store %arg10[%c0_5, %c0_6, %c384], %9 {strides = array<i32>} : memref<2x8x512xf32, #tpu.memory_space<vmem>>, vector<1x8x17xf32>,
    %cst_7 = arith.constant 0.000000e+00 : f32
    %10 = vector.broadcast %cst_7 : f32 to vector<4x17xf32>
    %c0_8 = arith.constant 0 : index
    %c0_9 = arith.constant 0 : index
    %c111_10 = arith.constant 111 : index
    %11 = vector.load %arg11[%c0_8, %c0_9, %c111_10] : memref<2x4x512xf32, #tpu.memory_space<vmem>>, vector<1x4x17xf32>
    %12 = vector.shape_cast %11 : vector<1x4x17xf32> to vector<4x17xf32>
    %13 = vector.shape_cast %10 : vector<4x17xf32> to vector<1x4x17xf32>
    tpu.vector_store %arg11[%c0_8, %c0_9, %c111_10], %13 {strides = array<i32>} : memref<2x4x512xf32, #tpu.memory_space<vmem>>, vector<1x4x17xf32>,
    %cst_11 = arith.constant 0.000000e+00 : f32
    %14 = vector.broadcast %cst_11 : f32 to vector<4x17xf32>
    %c0_12 = arith.constant 0 : index
    %c0_13 = arith.constant 0 : index
    %c384_14 = arith.constant 384 : index
    %15 = vector.load %arg11[%c0_12, %c0_13, %c384_14] : memref<2x4x512xf32, #tpu.memory_space<vmem>>, vector<1x4x17xf32>
    %16 = vector.shape_cast %15 : vector<1x4x17xf32> to vector<4x17xf32>
    %17 = vector.shape_cast %14 : vector<4x17xf32> to vector<1x4x17xf32>
    tpu.vector_store %arg11[%c0_12, %c0_13, %c384_14], %17 {strides = array<i32>} : memref<2x4x512xf32, #tpu.memory_space<vmem>>, vector<1x4x17xf32>,
    %cst_15 = arith.constant 0.000000e+00 : f32
    %18 = vector.broadcast %cst_15 : f32 to vector<8x17xf32>
    %c1_16 = arith.constant 1 : index
    %c0_17 = arith.constant 0 : index
    %c111_18 = arith.constant 111 : index
    %19 = vector.load %arg10[%c1_16, %c0_17, %c111_18] : memref<2x8x512xf32, #tpu.memory_space<vmem>>, vector<1x8x17xf32>
    %20 = vector.shape_cast %19 : vector<1x8x17xf32> to vector<8x17xf32>
    %21 = vector.shape_cast %18 : vector<8x17xf32> to vector<1x8x17xf32>
    tpu.vector_store %arg10[%c1_16, %c0_17, %c111_18], %21 {strides = array<i32>} : memref<2x8x512xf32, #tpu.memory_space<vmem>>, vector<1x8x17xf32>,
    %cst_19 = arith.constant 0.000000e+00 : f32
    %22 = vector.broadcast %cst_19 : f32 to vector<8x17xf32>
    %c1_20 = arith.constant 1 : index
    %c0_21 = arith.constant 0 : index
    %c384_22 = arith.constant 384 : index
    %23 = vector.load %arg10[%c1_20, %c0_21, %c384_22] : memref<2x8x512xf32, #tpu.memory_space<vmem>>, vector<1x8x17xf32>
    %24 = vector.shape_cast %23 : vector<1x8x17xf32> to vector<8x17xf32>
    %25 = vector.shape_cast %22 : vector<8x17xf32> to vector<1x8x17xf32>
    tpu.vector_store %arg10[%c1_20, %c0_21, %c384_22], %25 {strides = array<i32>} : memref<2x8x512xf32, #tpu.memory_space<vmem>>, vector<1x8x17xf32>,
    %cst_23 = arith.constant 0.000000e+00 : f32
    %26 = vector.broadcast %cst_23 : f32 to vector<4x17xf32>
    %c1_24 = arith.constant 1 : index
    %c0_25 = arith.constant 0 : index
    %c111_26 = arith.constant 111 : index
    %27 = vector.load %arg11[%c1_24, %c0_25, %c111_26] : memref<2x4x512xf32, #tpu.memory_space<vmem>>, vector<1x4x17xf32>
    %28 = vector.shape_cast %27 : vector<1x4x17xf32> to vector<4x17xf32>
    %29 = vector.shape_cast %26 : vector<4x17xf32> to vector<1x4x17xf32>
    tpu.vector_store %arg11[%c1_24, %c0_25, %c111_26], %29 {strides = array<i32>} : memref<2x4x512xf32, #tpu.memory_space<vmem>>, vector<1x4x17xf32>,
    %cst_27 = arith.constant 0.000000e+00 : f32
    %30 = vector.broadcast %cst_27 : f32 to vector<4x17xf32>
    %c1_28 = arith.constant 1 : index
    %c0_29 = arith.constant 0 : index
    %c384_30 = arith.constant 384 : index
    %31 = vector.load %arg11[%c1_28, %c0_29, %c384_30] : memref<2x4x512xf32, #tpu.memory_space<vmem>>, vector<1x4x17xf32>
    %32 = vector.shape_cast %31 : vector<1x4x17xf32> to vector<4x17xf32>
    %33 = vector.shape_cast %30 : vector<4x17xf32> to vector<1x4x17xf32>
    tpu.vector_store %arg11[%c1_28, %c0_29, %c384_30], %33 {strides = array<i32>} : memref<2x4x512xf32, #tpu.memory_space<vmem>>, vector<1x4x17xf32>,
    %c0_31 = arith.constant 0 : index
    %c0_32 = arith.constant 0 : index
    %c0_33 = arith.constant 0 : index
    %34 = vector.load %arg1[%c0_31, %c0_32, %c0_33] : memref<2x4x64xf32, #tpu.memory_space<vmem>>, vector<2x4x64xf32>
    %35 = vector.shape_cast %34 : vector<2x4x64xf32> to vector<8x64xf32>
    %c0_34 = arith.constant 0 : index
    %c0_35 = arith.constant 0 : index
    %36 = vector.load %arg4[%c0_34, %c0_35] : memref<64x256xf32, #tpu.memory_space<vmem>>, vector<64x256xf32>
    %cst_36 = arith.constant dense<0.000000e+00> : vector<8x256xf32>
    %37 = tpu.matmul %35, %36, %cst_36 {dimension_numbers = #tpu.dot_dimension_numbers<[1], [0], [0], [1], [0, 0, 1, 1], [], []>} : vector<8x64xf32>, vector<64x256xf32>, vector<8x256xf32> -> vector<8x256xf32>
    %c0_37 = arith.constant 0 : index
    %c0_38 = arith.constant 0 : index
    %c0_39 = arith.constant 0 : index
    %38 = vector.load %arg2[%c0_37, %c0_38, %c0_39] : memref<2x4x256xf32, #tpu.memory_space<vmem>>, vector<1x4x256xf32>
    %39 = vector.shape_cast %38 : vector<1x4x256xf32> to vector<4x256xf32>
    %40 = vector.extract_strided_slice %37 {offsets = [0, 0], sizes = [4, 256], strides = [1, 1]} : vector<8x256xf32> to vector<4x256xf32>
    %41 = tpu.concatenate %39, %40 in 0 : vector<4x256xf32>, vector<4x256xf32> -> vector<8x256xf32>
    %c0_40 = arith.constant 0 : index
    %c0_41 = arith.constant 0 : index
    %c128 = arith.constant 128 : index
    %42 = vector.load %arg10[%c0_40, %c0_41, %c128] : memref<2x8x512xf32, #tpu.memory_space<vmem>>, vector<1x8x256xf32>
    %43 = vector.shape_cast %42 : vector<1x8x256xf32> to vector<8x256xf32>
    %44 = vector.shape_cast %41 : vector<8x256xf32> to vector<1x8x256xf32>
    tpu.vector_store %arg10[%c0_40, %c0_41, %c128], %44 {strides = array<i32>} : memref<2x8x512xf32, #tpu.memory_space<vmem>>, vector<1x8x256xf32>,
    %c1_42 = arith.constant 1 : index
    %c0_43 = arith.constant 0 : index
    %c0_44 = arith.constant 0 : index
    %45 = vector.load %arg2[%c1_42, %c0_43, %c0_44] : memref<2x4x256xf32, #tpu.memory_space<vmem>>, vector<1x4x256xf32>
    %46 = vector.shape_cast %45 : vector<1x4x256xf32> to vector<4x256xf32>
    %47 = vector.extract_strided_slice %37 {offsets = [4, 0], sizes = [4, 256], strides = [1, 1]} : vector<8x256xf32> to vector<4x256xf32>
    %48 = tpu.concatenate %46, %47 in 0 : vector<4x256xf32>, vector<4x256xf32> -> vector<8x256xf32>
    %c1_45 = arith.constant 1 : index
    %c0_46 = arith.constant 0 : index
    %c128_47 = arith.constant 128 : index
    %49 = vector.load %arg10[%c1_45, %c0_46, %c128_47] : memref<2x8x512xf32, #tpu.memory_space<vmem>>, vector<1x8x256xf32>
    %50 = vector.shape_cast %49 : vector<1x8x256xf32> to vector<8x256xf32>
    %51 = vector.shape_cast %48 : vector<8x256xf32> to vector<1x8x256xf32>
    tpu.vector_store %arg10[%c1_45, %c0_46, %c128_47], %51 {strides = array<i32>} : memref<2x8x512xf32, #tpu.memory_space<vmem>>, vector<1x8x256xf32>,
    %c0_48 = arith.constant 0 : index
    %c0_49 = arith.constant 0 : index
    %c111_50 = arith.constant 111 : index
    %52 = vector.load %arg10[%c0_48, %c0_49, %c111_50] : memref<2x8x512xf32, #tpu.memory_space<vmem>>, vector<1x8x256xf32>
    %53 = vector.shape_cast %52 : vector<1x8x256xf32> to vector<8x256xf32>
    %54 = vector.broadcast %0 : vector<1x256xf32> to vector<8x256xf32>
    %55 = arith.mulf %53, %54 : vector<8x256xf32>
    %c0_51 = arith.constant 0 : index
    %c0_52 = arith.constant 0 : index
    %56 = vector.load %arg12[%c0_51, %c0_52] : memref<72x512xf32, #tpu.memory_space<vmem>>, vector<8x256xf32>
    tpu.vector_store %arg12[%c0_51, %c0_52], %55 {strides = array<i32>} : memref<72x512xf32, #tpu.memory_space<vmem>>, vector<8x256xf32>,
    %c0_53 = arith.constant 0 : index
    %c0_54 = arith.constant 0 : index
    %c112 = arith.constant 112 : index
    %57 = vector.load %arg10[%c0_53, %c0_54, %c112] : memref<2x8x512xf32, #tpu.memory_space<vmem>>, vector<1x8x256xf32>
    %58 = vector.shape_cast %57 : vector<1x8x256xf32> to vector<8x256xf32>
    %c8 = arith.constant 8 : index
    %c0_55 = arith.constant 0 : index
    %59 = vector.load %arg12[%c8, %c0_55] : memref<72x512xf32, #tpu.memory_space<vmem>>, vector<8x256xf32>
    tpu.vector_store %arg12[%c8, %c0_55], %58 {strides = array<i32>} : memref<72x512xf32, #tpu.memory_space<vmem>>, vector<8x256xf32>,
    %c0_56 = arith.constant 0 : index
    %c0_57 = arith.constant 0 : index
    %c113 = arith.constant 113 : index
    %60 = vector.load %arg10[%c0_56, %c0_57, %c113] : memref<2x8x512xf32, #tpu.memory_space<vmem>>, vector<1x8x256xf32>
    %61 = vector.shape_cast %60 : vector<1x8x256xf32> to vector<8x256xf32>
    %62 = vector.broadcast %1 : vector<1x256xf32> to vector<8x256xf32>
    %63 = arith.mulf %61, %62 : vector<8x256xf32>
    %c16 = arith.constant 16 : index
    %c0_58 = arith.constant 0 : index
    %64 = vector.load %arg12[%c16, %c0_58] : memref<72x512xf32, #tpu.memory_space<vmem>>, vector<8x256xf32>
    tpu.vector_store %arg12[%c16, %c0_58], %63 {strides = array<i32>} : memref<72x512xf32, #tpu.memory_space<vmem>>, vector<8x256xf32>,
    %c0_59 = arith.constant 0 : index
    %c0_60 = arith.constant 0 : index
    %c127 = arith.constant 127 : index
    %65 = vector.load %arg10[%c0_59, %c0_60, %c127] : memref<2x8x512xf32, #tpu.memory_space<vmem>>, vector<1x8x256xf32>
    %66 = vector.shape_cast %65 : vector<1x8x256xf32> to vector<8x256xf32>
    %67 = vector.broadcast %0 : vector<1x256xf32> to vector<8x256xf32>
    %68 = arith.mulf %66, %67 : vector<8x256xf32>
    %c24 = arith.constant 24 : index
    %c0_61 = arith.constant 0 : index
    %69 = vector.load %arg12[%c24, %c0_61] : memref<72x512xf32, #tpu.memory_space<vmem>>, vector<8x256xf32>
    tpu.vector_store %arg12[%c24, %c0_61], %68 {strides = array<i32>} : memref<72x512xf32, #tpu.memory_space<vmem>>, vector<8x256xf32>,
    %c0_62 = arith.constant 0 : index
    %c0_63 = arith.constant 0 : index
    %c128_64 = arith.constant 128 : index
    %70 = vector.load %arg10[%c0_62, %c0_63, %c128_64] : memref<2x8x512xf32, #tpu.memory_space<vmem>>, vector<1x8x256xf32>
    %71 = vector.shape_cast %70 : vector<1x8x256xf32> to vector<8x256xf32>
    %c32 = arith.constant 32 : index
    %c0_65 = arith.constant 0 : index
    %72 = vector.load %arg12[%c32, %c0_65] : memref<72x512xf32, #tpu.memory_space<vmem>>, vector<8x256xf32>
    tpu.vector_store %arg12[%c32, %c0_65], %71 {strides = array<i32>} : memref<72x512xf32, #tpu.memory_space<vmem>>, vector<8x256xf32>,
    %c0_66 = arith.constant 0 : index
    %c0_67 = arith.constant 0 : index
    %c129 = arith.constant 129 : index
    %73 = vector.load %arg10[%c0_66, %c0_67, %c129] : memref<2x8x512xf32, #tpu.memory_space<vmem>>, vector<1x8x256xf32>
    %74 = vector.shape_cast %73 : vector<1x8x256xf32> to vector<8x256xf32>
    %75 = vector.broadcast %1 : vector<1x256xf32> to vector<8x256xf32>
    %76 = arith.mulf %74, %75 : vector<8x256xf32>
    %c40 = arith.constant 40 : index
    %c0_68 = arith.constant 0 : index
    %77 = vector.load %arg12[%c40, %c0_68] : memref<72x512xf32, #tpu.memory_space<vmem>>, vector<8x256xf32>
    tpu.vector_store %arg12[%c40, %c0_68], %76 {strides = array<i32>} : memref<72x512xf32, #tpu.memory_space<vmem>>, vector<8x256xf32>,
    %c0_69 = arith.constant 0 : index
    %c0_70 = arith.constant 0 : index
    %c143 = arith.constant 143 : index
    %78 = vector.load %arg10[%c0_69, %c0_70, %c143] : memref<2x8x512xf32, #tpu.memory_space<vmem>>, vector<1x8x256xf32>
    %79 = vector.shape_cast %78 : vector<1x8x256xf32> to vector<8x256xf32>
    %80 = vector.broadcast %0 : vector<1x256xf32> to vector<8x256xf32>
    %81 = arith.mulf %79, %80 : vector<8x256xf32>
    %c48 = arith.constant 48 : index
    %c0_71 = arith.constant 0 : index
    %82 = vector.load %arg12[%c48, %c0_71] : memref<72x512xf32, #tpu.memory_space<vmem>>, vector<8x256xf32>
    tpu.vector_store %arg12[%c48, %c0_71], %81 {strides = array<i32>} : memref<72x512xf32, #tpu.memory_space<vmem>>, vector<8x256xf32>,
    %c0_72 = arith.constant 0 : index
    %c0_73 = arith.constant 0 : index
    %c144 = arith.constant 144 : index
    %83 = vector.load %arg10[%c0_72, %c0_73, %c144] : memref<2x8x512xf32, #tpu.memory_space<vmem>>, vector<1x8x256xf32>
    %84 = vector.shape_cast %83 : vector<1x8x256xf32> to vector<8x256xf32>
    %c56 = arith.constant 56 : index
    %c0_74 = arith.constant 0 : index
    %85 = vector.load %arg12[%c56, %c0_74] : memref<72x512xf32, #tpu.memory_space<vmem>>, vector<8x256xf32>
    tpu.vector_store %arg12[%c56, %c0_74], %84 {strides = array<i32>} : memref<72x512xf32, #tpu.memory_space<vmem>>, vector<8x256xf32>,
    %c0_75 = arith.constant 0 : index
    %c0_76 = arith.constant 0 : index
    %c145 = arith.constant 145 : index
    %86 = vector.load %arg10[%c0_75, %c0_76, %c145] : memref<2x8x512xf32, #tpu.memory_space<vmem>>, vector<1x8x256xf32>
    %87 = vector.shape_cast %86 : vector<1x8x256xf32> to vector<8x256xf32>
    %88 = vector.broadcast %1 : vector<1x256xf32> to vector<8x256xf32>
    %89 = arith.mulf %87, %88 : vector<8x256xf32>
    %c64 = arith.constant 64 : index
    %c0_77 = arith.constant 0 : index
    %90 = vector.load %arg12[%c64, %c0_77] : memref<72x512xf32, #tpu.memory_space<vmem>>, vector<8x256xf32>
    tpu.vector_store %arg12[%c64, %c0_77], %89 {strides = array<i32>} : memref<72x512xf32, #tpu.memory_space<vmem>>, vector<8x256xf32>,
    %c1_78 = arith.constant 1 : index
    %c0_79 = arith.constant 0 : index
    %c111_80 = arith.constant 111 : index
    %91 = vector.load %arg10[%c1_78, %c0_79, %c111_80] : memref<2x8x512xf32, #tpu.memory_space<vmem>>, vector<1x8x256xf32>
    %92 = vector.shape_cast %91 : vector<1x8x256xf32> to vector<8x256xf32>
    %93 = vector.broadcast %0 : vector<1x256xf32> to vector<8x256xf32>
    %94 = arith.mulf %92, %93 : vector<8x256xf32>
    %c0_81 = arith.constant 0 : index
    %c256 = arith.constant 256 : index
    %95 = vector.load %arg12[%c0_81, %c256] : memref<72x512xf32, #tpu.memory_space<vmem>>, vector<8x256xf32>
    tpu.vector_store %arg12[%c0_81, %c256], %94 {strides = array<i32>} : memref<72x512xf32, #tpu.memory_space<vmem>>, vector<8x256xf32>,
    %c1_82 = arith.constant 1 : index
    %c0_83 = arith.constant 0 : index
    %c112_84 = arith.constant 112 : index
    %96 = vector.load %arg10[%c1_82, %c0_83, %c112_84] : memref<2x8x512xf32, #tpu.memory_space<vmem>>, vector<1x8x256xf32>
    %97 = vector.shape_cast %96 : vector<1x8x256xf32> to vector<8x256xf32>
    %c8_85 = arith.constant 8 : index
    %c256_86 = arith.constant 256 : index
    %98 = vector.load %arg12[%c8_85, %c256_86] : memref<72x512xf32, #tpu.memory_space<vmem>>, vector<8x256xf32>
    tpu.vector_store %arg12[%c8_85, %c256_86], %97 {strides = array<i32>} : memref<72x512xf32, #tpu.memory_space<vmem>>, vector<8x256xf32>,
    %c1_87 = arith.constant 1 : index
    %c0_88 = arith.constant 0 : index
    %c113_89 = arith.constant 113 : index
    %99 = vector.load %arg10[%c1_87, %c0_88, %c113_89] : memref<2x8x512xf32, #tpu.memory_space<vmem>>, vector<1x8x256xf32>
    %100 = vector.shape_cast %99 : vector<1x8x256xf32> to vector<8x256xf32>
    %101 = vector.broadcast %1 : vector<1x256xf32> to vector<8x256xf32>
    %102 = arith.mulf %100, %101 : vector<8x256xf32>
    %c16_90 = arith.constant 16 : index
    %c256_91 = arith.constant 256 : index
    %103 = vector.load %arg12[%c16_90, %c256_91] : memref<72x512xf32, #tpu.memory_space<vmem>>, vector<8x256xf32>
    tpu.vector_store %arg12[%c16_90, %c256_91], %102 {strides = array<i32>} : memref<72x512xf32, #tpu.memory_space<vmem>>, vector<8x256xf32>,
    %c1_92 = arith.constant 1 : index
    %c0_93 = arith.constant 0 : index
    %c127_94 = arith.constant 127 : index
    %104 = vector.load %arg10[%c1_92, %c0_93, %c127_94] : memref<2x8x512xf32, #tpu.memory_space<vmem>>, vector<1x8x256xf32>
    %105 = vector.shape_cast %104 : vector<1x8x256xf32> to vector<8x256xf32>
    %106 = vector.broadcast %0 : vector<1x256xf32> to vector<8x256xf32>
    %107 = arith.mulf %105, %106 : vector<8x256xf32>
    %c24_95 = arith.constant 24 : index
    %c256_96 = arith.constant 256 : index
    %108 = vector.load %arg12[%c24_95, %c256_96] : memref<72x512xf32, #tpu.memory_space<vmem>>, vector<8x256xf32>
    tpu.vector_store %arg12[%c24_95, %c256_96], %107 {strides = array<i32>} : memref<72x512xf32, #tpu.memory_space<vmem>>, vector<8x256xf32>,
    %c1_97 = arith.constant 1 : index
    %c0_98 = arith.constant 0 : index
    %c128_99 = arith.constant 128 : index
    %109 = vector.load %arg10[%c1_97, %c0_98, %c128_99] : memref<2x8x512xf32, #tpu.memory_space<vmem>>, vector<1x8x256xf32>
    %110 = vector.shape_cast %109 : vector<1x8x256xf32> to vector<8x256xf32>
    %c32_100 = arith.constant 32 : index
    %c256_101 = arith.constant 256 : index
    %111 = vector.load %arg12[%c32_100, %c256_101] : memref<72x512xf32, #tpu.memory_space<vmem>>, vector<8x256xf32>
    tpu.vector_store %arg12[%c32_100, %c256_101], %110 {strides = array<i32>} : memref<72x512xf32, #tpu.memory_space<vmem>>, vector<8x256xf32>,
    %c1_102 = arith.constant 1 : index
    %c0_103 = arith.constant 0 : index
    %c129_104 = arith.constant 129 : index
    %112 = vector.load %arg10[%c1_102, %c0_103, %c129_104] : memref<2x8x512xf32, #tpu.memory_space<vmem>>, vector<1x8x256xf32>
    %113 = vector.shape_cast %112 : vector<1x8x256xf32> to vector<8x256xf32>
    %114 = vector.broadcast %1 : vector<1x256xf32> to vector<8x256xf32>
    %115 = arith.mulf %113, %114 : vector<8x256xf32>
    %c40_105 = arith.constant 40 : index
    %c256_106 = arith.constant 256 : index
    %116 = vector.load %arg12[%c40_105, %c256_106] : memref<72x512xf32, #tpu.memory_space<vmem>>, vector<8x256xf32>
    tpu.vector_store %arg12[%c40_105, %c256_106], %115 {strides = array<i32>} : memref<72x512xf32, #tpu.memory_space<vmem>>, vector<8x256xf32>,
    %c1_107 = arith.constant 1 : index
    %c0_108 = arith.constant 0 : index
    %c143_109 = arith.constant 143 : index
    %117 = vector.load %arg10[%c1_107, %c0_108, %c143_109] : memref<2x8x512xf32, #tpu.memory_space<vmem>>, vector<1x8x256xf32>
    %118 = vector.shape_cast %117 : vector<1x8x256xf32> to vector<8x256xf32>
    %119 = vector.broadcast %0 : vector<1x256xf32> to vector<8x256xf32>
    %120 = arith.mulf %118, %119 : vector<8x256xf32>
    %c48_110 = arith.constant 48 : index
    %c256_111 = arith.constant 256 : index
    %121 = vector.load %arg12[%c48_110, %c256_111] : memref<72x512xf32, #tpu.memory_space<vmem>>, vector<8x256xf32>
    tpu.vector_store %arg12[%c48_110, %c256_111], %120 {strides = array<i32>} : memref<72x512xf32, #tpu.memory_space<vmem>>, vector<8x256xf32>,
    %c1_112 = arith.constant 1 : index
    %c0_113 = arith.constant 0 : index
    %c144_114 = arith.constant 144 : index
    %122 = vector.load %arg10[%c1_112, %c0_113, %c144_114] : memref<2x8x512xf32, #tpu.memory_space<vmem>>, vector<1x8x256xf32>
    %123 = vector.shape_cast %122 : vector<1x8x256xf32> to vector<8x256xf32>
    %c56_115 = arith.constant 56 : index
    %c256_116 = arith.constant 256 : index
    %124 = vector.load %arg12[%c56_115, %c256_116] : memref<72x512xf32, #tpu.memory_space<vmem>>, vector<8x256xf32>
    tpu.vector_store %arg12[%c56_115, %c256_116], %123 {strides = array<i32>} : memref<72x512xf32, #tpu.memory_space<vmem>>, vector<8x256xf32>,
    %c1_117 = arith.constant 1 : index
    %c0_118 = arith.constant 0 : index
    %c145_119 = arith.constant 145 : index
    %125 = vector.load %arg10[%c1_117, %c0_118, %c145_119] : memref<2x8x512xf32, #tpu.memory_space<vmem>>, vector<1x8x256xf32>
    %126 = vector.shape_cast %125 : vector<1x8x256xf32> to vector<8x256xf32>
    %127 = vector.broadcast %1 : vector<1x256xf32> to vector<8x256xf32>
    %128 = arith.mulf %126, %127 : vector<8x256xf32>
    %c64_120 = arith.constant 64 : index
    %c256_121 = arith.constant 256 : index
    %129 = vector.load %arg12[%c64_120, %c256_121] : memref<72x512xf32, #tpu.memory_space<vmem>>, vector<8x256xf32>
    tpu.vector_store %arg12[%c64_120, %c256_121], %128 {strides = array<i32>} : memref<72x512xf32, #tpu.memory_space<vmem>>, vector<8x256xf32>,
    %c0_122 = arith.constant 0 : index
    %c0_123 = arith.constant 0 : index
    %130 = vector.load %arg5[%c0_122, %c0_123] : memref<4x72xf32, #tpu.memory_space<vmem>>, vector<4x72xf32>
    %c0_124 = arith.constant 0 : index
    %c0_125 = arith.constant 0 : index
    %131 = vector.load %arg12[%c0_124, %c0_125] : memref<72x512xf32, #tpu.memory_space<vmem>>, vector<72x512xf32>
    %cst_126 = arith.constant dense<0.000000e+00> : vector<4x512xf32>
    %132 = tpu.matmul %130, %131, %cst_126 {dimension_numbers = #tpu.dot_dimension_numbers<[1], [0], [0], [1], [0, 0, 1, 1], [], []>} : vector<4x72xf32>, vector<72x512xf32>, vector<4x512xf32> -> vector<4x512xf32>
    %c0_127 = arith.constant 0 : index
    %c0_128 = arith.constant 0 : index
    %133 = vector.load %arg6[%c0_127, %c0_128] : memref<4x1xf32, #tpu.memory_space<vmem>>, vector<4x1xf32>
    %134 = vector.broadcast %133 : vector<4x1xf32> to vector<4x512xf32>
    %135 = arith.addf %132, %134 : vector<4x512xf32>
    %136 = vector.extract_strided_slice %135 {offsets = [0, 0], sizes = [4, 256], strides = [1, 1]} : vector<4x512xf32> to vector<4x256xf32>
    %cst_129 = arith.constant dense<0.000000e+00> : vector<4xf32>
    %137 = vector.multi_reduction <add>, %136, %cst_129 [1] : vector<4x256xf32> to vector<4xf32>
    %138 = vector.shape_cast %137 : vector<4xf32> to vector<4x1xf32>
    %cst_130 = arith.constant 2.560000e+02 : f32
    %139 = vector.broadcast %cst_130 : f32 to vector<4x1xf32>
    %140 = arith.divf %138, %139 : vector<4x1xf32>
    %141 = arith.mulf %136, %136 : vector<4x256xf32>
    %cst_131 = arith.constant dense<0.000000e+00> : vector<4xf32>
    %142 = vector.multi_reduction <add>, %141, %cst_131 [1] : vector<4x256xf32> to vector<4xf32>
    %143 = vector.shape_cast %142 : vector<4xf32> to vector<4x1xf32>
    %cst_132 = arith.constant 2.560000e+02 : f32
    %144 = vector.broadcast %cst_132 : f32 to vector<4x1xf32>
    %145 = arith.divf %143, %144 : vector<4x1xf32>
    %146 = arith.mulf %140, %140 : vector<4x1xf32>
    %147 = arith.subf %145, %146 : vector<4x1xf32>
    %cst_133 = arith.constant 0.000000e+00 : f32
    %148 = vector.broadcast %cst_133 : f32 to vector<4x1xf32>
    %149 = arith.maximumf %147, %148 : vector<4x1xf32>
    %150 = vector.broadcast %140 : vector<4x1xf32> to vector<4x256xf32>
    %151 = arith.subf %136, %150 : vector<4x256xf32>
    %cst_134 = arith.constant 9.99999974E-6 : f32
    %152 = vector.broadcast %cst_134 : f32 to vector<4x1xf32>
    %153 = arith.addf %149, %152 : vector<4x1xf32>
    %154 = math.rsqrt %153 : vector<4x1xf32>
    %155 = vector.broadcast %154 : vector<4x1xf32> to vector<4x256xf32>
    %156 = arith.mulf %151, %155 : vector<4x256xf32>
    %cst_135 = arith.constant 0.000000e+00 : f32
    %157 = vector.broadcast %cst_135 : f32 to vector<4x256xf32>
    %158 = arith.maximumf %156, %157 : vector<4x256xf32>
    %159 = vector.extract_strided_slice %135 {offsets = [0, 256], sizes = [4, 256], strides = [1, 1]} : vector<4x512xf32> to vector<4x256xf32>
    %cst_136 = arith.constant dense<0.000000e+00> : vector<4xf32>
    %160 = vector.multi_reduction <add>, %159, %cst_136 [1] : vector<4x256xf32> to vector<4xf32>
    %161 = vector.shape_cast %160 : vector<4xf32> to vector<4x1xf32>
    %cst_137 = arith.constant 2.560000e+02 : f32
    %162 = vector.broadcast %cst_137 : f32 to vector<4x1xf32>
    %163 = arith.divf %161, %162 : vector<4x1xf32>
    %164 = arith.mulf %159, %159 : vector<4x256xf32>
    %cst_138 = arith.constant dense<0.000000e+00> : vector<4xf32>
    %165 = vector.multi_reduction <add>, %164, %cst_138 [1] : vector<4x256xf32> to vector<4xf32>
    %166 = vector.shape_cast %165 : vector<4xf32> to vector<4x1xf32>
    %cst_139 = arith.constant 2.560000e+02 : f32
    %167 = vector.broadcast %cst_139 : f32 to vector<4x1xf32>
    %168 = arith.divf %166, %167 : vector<4x1xf32>
    %169 = arith.mulf %163, %163 : vector<4x1xf32>
    %170 = arith.subf %168, %169 : vector<4x1xf32>
    %cst_140 = arith.constant 0.000000e+00 : f32
    %171 = vector.broadcast %cst_140 : f32 to vector<4x1xf32>
    %172 = arith.maximumf %170, %171 : vector<4x1xf32>
    %173 = vector.broadcast %163 : vector<4x1xf32> to vector<4x256xf32>
    %174 = arith.subf %159, %173 : vector<4x256xf32>
    %cst_141 = arith.constant 9.99999974E-6 : f32
    %175 = vector.broadcast %cst_141 : f32 to vector<4x1xf32>
    %176 = arith.addf %172, %175 : vector<4x1xf32>
    %177 = math.rsqrt %176 : vector<4x1xf32>
    %178 = vector.broadcast %177 : vector<4x1xf32> to vector<4x256xf32>
    %179 = arith.mulf %174, %178 : vector<4x256xf32>
    %cst_142 = arith.constant 0.000000e+00 : f32
    %180 = vector.broadcast %cst_142 : f32 to vector<4x256xf32>
    %181 = arith.maximumf %179, %180 : vector<4x256xf32>
    %c0_143 = arith.constant 0 : index
    %c0_144 = arith.constant 0 : index
    %c128_145 = arith.constant 128 : index
    %182 = vector.load %arg11[%c0_143, %c0_144, %c128_145] : memref<2x4x512xf32, #tpu.memory_space<vmem>>, vector<1x4x256xf32>
    %183 = vector.shape_cast %182 : vector<1x4x256xf32> to vector<4x256xf32>
    %184 = vector.shape_cast %158 : vector<4x256xf32> to vector<1x4x256xf32>
    tpu.vector_store %arg11[%c0_143, %c0_144, %c128_145], %184 {strides = array<i32>} : memref<2x4x512xf32, #tpu.memory_space<vmem>>, vector<1x4x256xf32>,
    %c1_146 = arith.constant 1 : index
    %c0_147 = arith.constant 0 : index
    %c128_148 = arith.constant 128 : index
    %185 = vector.load %arg11[%c1_146, %c0_147, %c128_148] : memref<2x4x512xf32, #tpu.memory_space<vmem>>, vector<1x4x256xf32>
    %186 = vector.shape_cast %185 : vector<1x4x256xf32> to vector<4x256xf32>
    %187 = vector.shape_cast %181 : vector<4x256xf32> to vector<1x4x256xf32>
    tpu.vector_store %arg11[%c1_146, %c0_147, %c128_148], %187 {strides = array<i32>} : memref<2x4x512xf32, #tpu.memory_space<vmem>>, vector<1x4x256xf32>,
    %c0_149 = arith.constant 0 : index
    %c0_150 = arith.constant 0 : index
    %c111_151 = arith.constant 111 : index
    %188 = vector.load %arg11[%c0_149, %c0_150, %c111_151] : memref<2x4x512xf32, #tpu.memory_space<vmem>>, vector<1x4x256xf32>
    %189 = vector.shape_cast %188 : vector<1x4x256xf32> to vector<4x256xf32>
    %190 = vector.broadcast %0 : vector<1x256xf32> to vector<4x256xf32>
    %191 = arith.mulf %189, %190 : vector<4x256xf32>
    %c0_152 = arith.constant 0 : index
    %c0_153 = arith.constant 0 : index
    %192 = vector.load %arg13[%c0_152, %c0_153] : memref<36x512xf32, #tpu.memory_space<vmem>>, vector<4x256xf32>
    tpu.vector_store %arg13[%c0_152, %c0_153], %191 {strides = array<i32>} : memref<36x512xf32, #tpu.memory_space<vmem>>, vector<4x256xf32>,
    %c0_154 = arith.constant 0 : index
    %c0_155 = arith.constant 0 : index
    %c112_156 = arith.constant 112 : index
    %193 = vector.load %arg11[%c0_154, %c0_155, %c112_156] : memref<2x4x512xf32, #tpu.memory_space<vmem>>, vector<1x4x256xf32>
    %194 = vector.shape_cast %193 : vector<1x4x256xf32> to vector<4x256xf32>
    %c4 = arith.constant 4 : index
    %c0_157 = arith.constant 0 : index
    %195 = vector.load %arg13[%c4, %c0_157] : memref<36x512xf32, #tpu.memory_space<vmem>>, vector<4x256xf32>
    tpu.vector_store %arg13[%c4, %c0_157], %194 {strides = array<i32>} : memref<36x512xf32, #tpu.memory_space<vmem>>, vector<4x256xf32>,
    %c0_158 = arith.constant 0 : index
    %c0_159 = arith.constant 0 : index
    %c113_160 = arith.constant 113 : index
    %196 = vector.load %arg11[%c0_158, %c0_159, %c113_160] : memref<2x4x512xf32, #tpu.memory_space<vmem>>, vector<1x4x256xf32>
    %197 = vector.shape_cast %196 : vector<1x4x256xf32> to vector<4x256xf32>
    %198 = vector.broadcast %1 : vector<1x256xf32> to vector<4x256xf32>
    %199 = arith.mulf %197, %198 : vector<4x256xf32>
    %c8_161 = arith.constant 8 : index
    %c0_162 = arith.constant 0 : index
    %200 = vector.load %arg13[%c8_161, %c0_162] : memref<36x512xf32, #tpu.memory_space<vmem>>, vector<4x256xf32>
    tpu.vector_store %arg13[%c8_161, %c0_162], %199 {strides = array<i32>} : memref<36x512xf32, #tpu.memory_space<vmem>>, vector<4x256xf32>,
    %c0_163 = arith.constant 0 : index
    %c0_164 = arith.constant 0 : index
    %c127_165 = arith.constant 127 : index
    %201 = vector.load %arg11[%c0_163, %c0_164, %c127_165] : memref<2x4x512xf32, #tpu.memory_space<vmem>>, vector<1x4x256xf32>
    %202 = vector.shape_cast %201 : vector<1x4x256xf32> to vector<4x256xf32>
    %203 = vector.broadcast %0 : vector<1x256xf32> to vector<4x256xf32>
    %204 = arith.mulf %202, %203 : vector<4x256xf32>
    %c12 = arith.constant 12 : index
    %c0_166 = arith.constant 0 : index
    %205 = vector.load %arg13[%c12, %c0_166] : memref<36x512xf32, #tpu.memory_space<vmem>>, vector<4x256xf32>
    tpu.vector_store %arg13[%c12, %c0_166], %204 {strides = array<i32>} : memref<36x512xf32, #tpu.memory_space<vmem>>, vector<4x256xf32>,
    %c0_167 = arith.constant 0 : index
    %c0_168 = arith.constant 0 : index
    %c128_169 = arith.constant 128 : index
    %206 = vector.load %arg11[%c0_167, %c0_168, %c128_169] : memref<2x4x512xf32, #tpu.memory_space<vmem>>, vector<1x4x256xf32>
    %207 = vector.shape_cast %206 : vector<1x4x256xf32> to vector<4x256xf32>
    %c16_170 = arith.constant 16 : index
    %c0_171 = arith.constant 0 : index
    %208 = vector.load %arg13[%c16_170, %c0_171] : memref<36x512xf32, #tpu.memory_space<vmem>>, vector<4x256xf32>
    tpu.vector_store %arg13[%c16_170, %c0_171], %207 {strides = array<i32>} : memref<36x512xf32, #tpu.memory_space<vmem>>, vector<4x256xf32>,
    %c0_172 = arith.constant 0 : index
    %c0_173 = arith.constant 0 : index
    %c129_174 = arith.constant 129 : index
    %209 = vector.load %arg11[%c0_172, %c0_173, %c129_174] : memref<2x4x512xf32, #tpu.memory_space<vmem>>, vector<1x4x256xf32>
    %210 = vector.shape_cast %209 : vector<1x4x256xf32> to vector<4x256xf32>
    %211 = vector.broadcast %1 : vector<1x256xf32> to vector<4x256xf32>
    %212 = arith.mulf %210, %211 : vector<4x256xf32>
    %c20 = arith.constant 20 : index
    %c0_175 = arith.constant 0 : index
    %213 = vector.load %arg13[%c20, %c0_175] : memref<36x512xf32, #tpu.memory_space<vmem>>, vector<4x256xf32>
    tpu.vector_store %arg13[%c20, %c0_175], %212 {strides = array<i32>} : memref<36x512xf32, #tpu.memory_space<vmem>>, vector<4x256xf32>,
    %c0_176 = arith.constant 0 : index
    %c0_177 = arith.constant 0 : index
    %c143_178 = arith.constant 143 : index
    %214 = vector.load %arg11[%c0_176, %c0_177, %c143_178] : memref<2x4x512xf32, #tpu.memory_space<vmem>>, vector<1x4x256xf32>
    %215 = vector.shape_cast %214 : vector<1x4x256xf32> to vector<4x256xf32>
    %216 = vector.broadcast %0 : vector<1x256xf32> to vector<4x256xf32>
    %217 = arith.mulf %215, %216 : vector<4x256xf32>
    %c24_179 = arith.constant 24 : index
    %c0_180 = arith.constant 0 : index
    %218 = vector.load %arg13[%c24_179, %c0_180] : memref<36x512xf32, #tpu.memory_space<vmem>>, vector<4x256xf32>
    tpu.vector_store %arg13[%c24_179, %c0_180], %217 {strides = array<i32>} : memref<36x512xf32, #tpu.memory_space<vmem>>, vector<4x256xf32>,
    %c0_181 = arith.constant 0 : index
    %c0_182 = arith.constant 0 : index
    %c144_183 = arith.constant 144 : index
    %219 = vector.load %arg11[%c0_181, %c0_182, %c144_183] : memref<2x4x512xf32, #tpu.memory_space<vmem>>, vector<1x4x256xf32>
    %220 = vector.shape_cast %219 : vector<1x4x256xf32> to vector<4x256xf32>
    %c28 = arith.constant 28 : index
    %c0_184 = arith.constant 0 : index
    %221 = vector.load %arg13[%c28, %c0_184] : memref<36x512xf32, #tpu.memory_space<vmem>>, vector<4x256xf32>
    tpu.vector_store %arg13[%c28, %c0_184], %220 {strides = array<i32>} : memref<36x512xf32, #tpu.memory_space<vmem>>, vector<4x256xf32>,
    %c0_185 = arith.constant 0 : index
    %c0_186 = arith.constant 0 : index
    %c145_187 = arith.constant 145 : index
    %222 = vector.load %arg11[%c0_185, %c0_186, %c145_187] : memref<2x4x512xf32, #tpu.memory_space<vmem>>, vector<1x4x256xf32>
    %223 = vector.shape_cast %222 : vector<1x4x256xf32> to vector<4x256xf32>
    %224 = vector.broadcast %1 : vector<1x256xf32> to vector<4x256xf32>
    %225 = arith.mulf %223, %224 : vector<4x256xf32>
    %c32_188 = arith.constant 32 : index
    %c0_189 = arith.constant 0 : index
    %226 = vector.load %arg13[%c32_188, %c0_189] : memref<36x512xf32, #tpu.memory_space<vmem>>, vector<4x256xf32>
    tpu.vector_store %arg13[%c32_188, %c0_189], %225 {strides = array<i32>} : memref<36x512xf32, #tpu.memory_space<vmem>>, vector<4x256xf32>,
    %c1_190 = arith.constant 1 : index
    %c0_191 = arith.constant 0 : index
    %c111_192 = arith.constant 111 : index
    %227 = vector.load %arg11[%c1_190, %c0_191, %c111_192] : memref<2x4x512xf32, #tpu.memory_space<vmem>>, vector<1x4x256xf32>
    %228 = vector.shape_cast %227 : vector<1x4x256xf32> to vector<4x256xf32>
    %229 = vector.broadcast %0 : vector<1x256xf32> to vector<4x256xf32>
    %230 = arith.mulf %228, %229 : vector<4x256xf32>
    %c0_193 = arith.constant 0 : index
    %c256_194 = arith.constant 256 : index
    %231 = vector.load %arg13[%c0_193, %c256_194] : memref<36x512xf32, #tpu.memory_space<vmem>>, vector<4x256xf32>
    tpu.vector_store %arg13[%c0_193, %c256_194], %230 {strides = array<i32>} : memref<36x512xf32, #tpu.memory_space<vmem>>, vector<4x256xf32>,
    %c1_195 = arith.constant 1 : index
    %c0_196 = arith.constant 0 : index
    %c112_197 = arith.constant 112 : index
    %232 = vector.load %arg11[%c1_195, %c0_196, %c112_197] : memref<2x4x512xf32, #tpu.memory_space<vmem>>, vector<1x4x256xf32>
    %233 = vector.shape_cast %232 : vector<1x4x256xf32> to vector<4x256xf32>
    %c4_198 = arith.constant 4 : index
    %c256_199 = arith.constant 256 : index
    %234 = vector.load %arg13[%c4_198, %c256_199] : memref<36x512xf32, #tpu.memory_space<vmem>>, vector<4x256xf32>
    tpu.vector_store %arg13[%c4_198, %c256_199], %233 {strides = array<i32>} : memref<36x512xf32, #tpu.memory_space<vmem>>, vector<4x256xf32>,
    %c1_200 = arith.constant 1 : index
    %c0_201 = arith.constant 0 : index
    %c113_202 = arith.constant 113 : index
    %235 = vector.load %arg11[%c1_200, %c0_201, %c113_202] : memref<2x4x512xf32, #tpu.memory_space<vmem>>, vector<1x4x256xf32>
    %236 = vector.shape_cast %235 : vector<1x4x256xf32> to vector<4x256xf32>
    %237 = vector.broadcast %1 : vector<1x256xf32> to vector<4x256xf32>
    %238 = arith.mulf %236, %237 : vector<4x256xf32>
    %c8_203 = arith.constant 8 : index
    %c256_204 = arith.constant 256 : index
    %239 = vector.load %arg13[%c8_203, %c256_204] : memref<36x512xf32, #tpu.memory_space<vmem>>, vector<4x256xf32>
    tpu.vector_store %arg13[%c8_203, %c256_204], %238 {strides = array<i32>} : memref<36x512xf32, #tpu.memory_space<vmem>>, vector<4x256xf32>,
    %c1_205 = arith.constant 1 : index
    %c0_206 = arith.constant 0 : index
    %c127_207 = arith.constant 127 : index
    %240 = vector.load %arg11[%c1_205, %c0_206, %c127_207] : memref<2x4x512xf32, #tpu.memory_space<vmem>>, vector<1x4x256xf32>
    %241 = vector.shape_cast %240 : vector<1x4x256xf32> to vector<4x256xf32>
    %242 = vector.broadcast %0 : vector<1x256xf32> to vector<4x256xf32>
    %243 = arith.mulf %241, %242 : vector<4x256xf32>
    %c12_208 = arith.constant 12 : index
    %c256_209 = arith.constant 256 : index
    %244 = vector.load %arg13[%c12_208, %c256_209] : memref<36x512xf32, #tpu.memory_space<vmem>>, vector<4x256xf32>
    tpu.vector_store %arg13[%c12_208, %c256_209], %243 {strides = array<i32>} : memref<36x512xf32, #tpu.memory_space<vmem>>, vector<4x256xf32>,
    %c1_210 = arith.constant 1 : index
    %c0_211 = arith.constant 0 : index
    %c128_212 = arith.constant 128 : index
    %245 = vector.load %arg11[%c1_210, %c0_211, %c128_212] : memref<2x4x512xf32, #tpu.memory_space<vmem>>, vector<1x4x256xf32>
    %246 = vector.shape_cast %245 : vector<1x4x256xf32> to vector<4x256xf32>
    %c16_213 = arith.constant 16 : index
    %c256_214 = arith.constant 256 : index
    %247 = vector.load %arg13[%c16_213, %c256_214] : memref<36x512xf32, #tpu.memory_space<vmem>>, vector<4x256xf32>
    tpu.vector_store %arg13[%c16_213, %c256_214], %246 {strides = array<i32>} : memref<36x512xf32, #tpu.memory_space<vmem>>, vector<4x256xf32>,
    %c1_215 = arith.constant 1 : index
    %c0_216 = arith.constant 0 : index
    %c129_217 = arith.constant 129 : index
    %248 = vector.load %arg11[%c1_215, %c0_216, %c129_217] : memref<2x4x512xf32, #tpu.memory_space<vmem>>, vector<1x4x256xf32>
    %249 = vector.shape_cast %248 : vector<1x4x256xf32> to vector<4x256xf32>
    %250 = vector.broadcast %1 : vector<1x256xf32> to vector<4x256xf32>
    %251 = arith.mulf %249, %250 : vector<4x256xf32>
    %c20_218 = arith.constant 20 : index
    %c256_219 = arith.constant 256 : index
    %252 = vector.load %arg13[%c20_218, %c256_219] : memref<36x512xf32, #tpu.memory_space<vmem>>, vector<4x256xf32>
    tpu.vector_store %arg13[%c20_218, %c256_219], %251 {strides = array<i32>} : memref<36x512xf32, #tpu.memory_space<vmem>>, vector<4x256xf32>,
    %c1_220 = arith.constant 1 : index
    %c0_221 = arith.constant 0 : index
    %c143_222 = arith.constant 143 : index
    %253 = vector.load %arg11[%c1_220, %c0_221, %c143_222] : memref<2x4x512xf32, #tpu.memory_space<vmem>>, vector<1x4x256xf32>
    %254 = vector.shape_cast %253 : vector<1x4x256xf32> to vector<4x256xf32>
    %255 = vector.broadcast %0 : vector<1x256xf32> to vector<4x256xf32>
    %256 = arith.mulf %254, %255 : vector<4x256xf32>
    %c24_223 = arith.constant 24 : index
    %c256_224 = arith.constant 256 : index
    %257 = vector.load %arg13[%c24_223, %c256_224] : memref<36x512xf32, #tpu.memory_space<vmem>>, vector<4x256xf32>
    tpu.vector_store %arg13[%c24_223, %c256_224], %256 {strides = array<i32>} : memref<36x512xf32, #tpu.memory_space<vmem>>, vector<4x256xf32>,
    %c1_225 = arith.constant 1 : index
    %c0_226 = arith.constant 0 : index
    %c144_227 = arith.constant 144 : index
    %258 = vector.load %arg11[%c1_225, %c0_226, %c144_227] : memref<2x4x512xf32, #tpu.memory_space<vmem>>, vector<1x4x256xf32>
    %259 = vector.shape_cast %258 : vector<1x4x256xf32> to vector<4x256xf32>
    %c28_228 = arith.constant 28 : index
    %c256_229 = arith.constant 256 : index
    %260 = vector.load %arg13[%c28_228, %c256_229] : memref<36x512xf32, #tpu.memory_space<vmem>>, vector<4x256xf32>
    tpu.vector_store %arg13[%c28_228, %c256_229], %259 {strides = array<i32>} : memref<36x512xf32, #tpu.memory_space<vmem>>, vector<4x256xf32>,
    %c1_230 = arith.constant 1 : index
    %c0_231 = arith.constant 0 : index
    %c145_232 = arith.constant 145 : index
    %261 = vector.load %arg11[%c1_230, %c0_231, %c145_232] : memref<2x4x512xf32, #tpu.memory_space<vmem>>, vector<1x4x256xf32>
    %262 = vector.shape_cast %261 : vector<1x4x256xf32> to vector<4x256xf32>
    %263 = vector.broadcast %1 : vector<1x256xf32> to vector<4x256xf32>
    %264 = arith.mulf %262, %263 : vector<4x256xf32>
    %c32_233 = arith.constant 32 : index
    %c256_234 = arith.constant 256 : index
    %265 = vector.load %arg13[%c32_233, %c256_234] : memref<36x512xf32, #tpu.memory_space<vmem>>, vector<4x256xf32>
    tpu.vector_store %arg13[%c32_233, %c256_234], %264 {strides = array<i32>} : memref<36x512xf32, #tpu.memory_space<vmem>>, vector<4x256xf32>,
    %c0_235 = arith.constant 0 : index
    %c0_236 = arith.constant 0 : index
    %266 = vector.load %arg7[%c0_235, %c0_236] : memref<4x36xf32, #tpu.memory_space<vmem>>, vector<4x36xf32>
    %c0_237 = arith.constant 0 : index
    %c0_238 = arith.constant 0 : index
    %267 = vector.load %arg13[%c0_237, %c0_238] : memref<36x512xf32, #tpu.memory_space<vmem>>, vector<36x512xf32>
    %cst_239 = arith.constant dense<0.000000e+00> : vector<4x512xf32>
    %268 = tpu.matmul %266, %267, %cst_239 {dimension_numbers = #tpu.dot_dimension_numbers<[1], [0], [0], [1], [0, 0, 1, 1], [], []>} : vector<4x36xf32>, vector<36x512xf32>, vector<4x512xf32> -> vector<4x512xf32>
    %c0_240 = arith.constant 0 : index
    %c0_241 = arith.constant 0 : index
    %269 = vector.load %arg8[%c0_240, %c0_241] : memref<4x1xf32, #tpu.memory_space<vmem>>, vector<4x1xf32>
    %270 = vector.broadcast %269 : vector<4x1xf32> to vector<4x512xf32>
    %271 = arith.addf %268, %270 : vector<4x512xf32>
    %272 = vector.extract_strided_slice %271 {offsets = [0, 0], sizes = [4, 256], strides = [1, 1]} : vector<4x512xf32> to vector<4x256xf32>
    %cst_242 = arith.constant dense<0.000000e+00> : vector<4xf32>
    %273 = vector.multi_reduction <add>, %272, %cst_242 [1] : vector<4x256xf32> to vector<4xf32>
    %274 = vector.shape_cast %273 : vector<4xf32> to vector<4x1xf32>
    %cst_243 = arith.constant 2.560000e+02 : f32
    %275 = vector.broadcast %cst_243 : f32 to vector<4x1xf32>
    %276 = arith.divf %274, %275 : vector<4x1xf32>
    %277 = arith.mulf %272, %272 : vector<4x256xf32>
    %cst_244 = arith.constant dense<0.000000e+00> : vector<4xf32>
    %278 = vector.multi_reduction <add>, %277, %cst_244 [1] : vector<4x256xf32> to vector<4xf32>
    %279 = vector.shape_cast %278 : vector<4xf32> to vector<4x1xf32>
    %cst_245 = arith.constant 2.560000e+02 : f32
    %280 = vector.broadcast %cst_245 : f32 to vector<4x1xf32>
    %281 = arith.divf %279, %280 : vector<4x1xf32>
    %282 = arith.mulf %276, %276 : vector<4x1xf32>
    %283 = arith.subf %281, %282 : vector<4x1xf32>
    %cst_246 = arith.constant 0.000000e+00 : f32
    %284 = vector.broadcast %cst_246 : f32 to vector<4x1xf32>
    %285 = arith.maximumf %283, %284 : vector<4x1xf32>
    %286 = vector.broadcast %276 : vector<4x1xf32> to vector<4x256xf32>
    %287 = arith.subf %272, %286 : vector<4x256xf32>
    %cst_247 = arith.constant 9.99999974E-6 : f32
    %288 = vector.broadcast %cst_247 : f32 to vector<4x1xf32>
    %289 = arith.addf %285, %288 : vector<4x1xf32>
    %290 = math.rsqrt %289 : vector<4x1xf32>
    %291 = vector.broadcast %290 : vector<4x1xf32> to vector<4x256xf32>
    %292 = arith.mulf %287, %291 : vector<4x256xf32>
    %cst_248 = arith.constant 0.000000e+00 : f32
    %293 = vector.broadcast %cst_248 : f32 to vector<4x256xf32>
    %294 = arith.maximumf %292, %293 : vector<4x256xf32>
    %295 = vector.extract_strided_slice %271 {offsets = [0, 256], sizes = [4, 256], strides = [1, 1]} : vector<4x512xf32> to vector<4x256xf32>
    %cst_249 = arith.constant dense<0.000000e+00> : vector<4xf32>
    %296 = vector.multi_reduction <add>, %295, %cst_249 [1] : vector<4x256xf32> to vector<4xf32>
    %297 = vector.shape_cast %296 : vector<4xf32> to vector<4x1xf32>
    %cst_250 = arith.constant 2.560000e+02 : f32
    %298 = vector.broadcast %cst_250 : f32 to vector<4x1xf32>
    %299 = arith.divf %297, %298 : vector<4x1xf32>
    %300 = arith.mulf %295, %295 : vector<4x256xf32>
    %cst_251 = arith.constant dense<0.000000e+00> : vector<4xf32>
    %301 = vector.multi_reduction <add>, %300, %cst_251 [1] : vector<4x256xf32> to vector<4xf32>
    %302 = vector.shape_cast %301 : vector<4xf32> to vector<4x1xf32>
    %cst_252 = arith.constant 2.560000e+02 : f32
    %303 = vector.broadcast %cst_252 : f32 to vector<4x1xf32>
    %304 = arith.divf %302, %303 : vector<4x1xf32>
    %305 = arith.mulf %299, %299 : vector<4x1xf32>
    %306 = arith.subf %304, %305 : vector<4x1xf32>
    %cst_253 = arith.constant 0.000000e+00 : f32
    %307 = vector.broadcast %cst_253 : f32 to vector<4x1xf32>
    %308 = arith.maximumf %306, %307 : vector<4x1xf32>
    %309 = vector.broadcast %299 : vector<4x1xf32> to vector<4x256xf32>
    %310 = arith.subf %295, %309 : vector<4x256xf32>
    %cst_254 = arith.constant 9.99999974E-6 : f32
    %311 = vector.broadcast %cst_254 : f32 to vector<4x1xf32>
    %312 = arith.addf %308, %311 : vector<4x1xf32>
    %313 = math.rsqrt %312 : vector<4x1xf32>
    %314 = vector.broadcast %313 : vector<4x1xf32> to vector<4x256xf32>
    %315 = arith.mulf %310, %314 : vector<4x256xf32>
    %cst_255 = arith.constant 0.000000e+00 : f32
    %316 = vector.broadcast %cst_255 : f32 to vector<4x256xf32>
    %317 = arith.maximumf %315, %316 : vector<4x256xf32>
    %c0_256 = arith.constant 0 : index
    %c0_257 = arith.constant 0 : index
    %c0_258 = arith.constant 0 : index
    %318 = vector.load %arg9[%c0_256, %c0_257, %c0_258] : memref<2x4x256xf32, #tpu.memory_space<vmem>>, vector<1x4x256xf32>
    %319 = vector.shape_cast %318 : vector<1x4x256xf32> to vector<4x256xf32>
    %320 = vector.shape_cast %294 : vector<4x256xf32> to vector<1x4x256xf32>
    tpu.vector_store %arg9[%c0_256, %c0_257, %c0_258], %320 {strides = array<i32>} : memref<2x4x256xf32, #tpu.memory_space<vmem>>, vector<1x4x256xf32>,
    %c1_259 = arith.constant 1 : index
    %c0_260 = arith.constant 0 : index
    %c0_261 = arith.constant 0 : index
    %321 = vector.load %arg9[%c1_259, %c0_260, %c0_261] : memref<2x4x256xf32, #tpu.memory_space<vmem>>, vector<1x4x256xf32>
    %322 = vector.shape_cast %321 : vector<1x4x256xf32> to vector<4x256xf32>
    %323 = vector.shape_cast %317 : vector<4x256xf32> to vector<1x4x256xf32>
    tpu.vector_store %arg9[%c1_259, %c0_260, %c0_261], %323 {strides = array<i32>} : memref<2x4x256xf32, #tpu.memory_space<vmem>>, vector<1x4x256xf32>,
    return
  }
  func.func @transform_0(%arg0: i32) -> (i32, i32, i32) {
    %c0_i32 = arith.constant 0 : i32
    %c0_i32_0 = arith.constant 0 : i32
    %c0_i32_1 = arith.constant 0 : i32
    return %arg0, %c0_i32, %c0_i32_0 : i32, i32, i32
  }
  func.func @transform_1(%arg0: i32) -> (i32, i32, i32) {
    %c0_i32 = arith.constant 0 : i32
    %c0_i32_0 = arith.constant 0 : i32
    %c0_i32_1 = arith.constant 0 : i32
    return %arg0, %c0_i32, %c0_i32_0 : i32, i32, i32
  }
  func.func @transform_2(%arg0: i32) -> (i32, i32) {
    %c0_i32 = arith.constant 0 : i32
    %c0_i32_0 = arith.constant 0 : i32
    %c0_i32_1 = arith.constant 0 : i32
    return %c0_i32, %c0_i32_0 : i32, i32
  }
  func.func @transform_3(%arg0: i32) -> (i32, i32) {
    %c0_i32 = arith.constant 0 : i32
    %c0_i32_0 = arith.constant 0 : i32
    %c0_i32_1 = arith.constant 0 : i32
    return %c0_i32, %c0_i32_0 : i32, i32
  }
  func.func @transform_4(%arg0: i32) -> (i32, i32) {
    %c0_i32 = arith.constant 0 : i32
    %c0_i32_0 = arith.constant 0 : i32
    %c0_i32_1 = arith.constant 0 : i32
    return %c0_i32, %c0_i32_0 : i32, i32
  }
  func.func @transform_5(%arg0: i32) -> (i32, i32) {
    %c0_i32 = arith.constant 0 : i32
    %c0_i32_0 = arith.constant 0 : i32
    %c0_i32_1 = arith.constant 0 : i32
    return %c0_i32, %c0_i32_0 : i32, i32
  }
  func.func @transform_6(%arg0: i32) -> (i32, i32) {
    %c0_i32 = arith.constant 0 : i32
    %c0_i32_0 = arith.constant 0 : i32
    %c0_i32_1 = arith.constant 0 : i32
    return %c0_i32, %c0_i32_0 : i32, i32
  }
  func.func @transform_7(%arg0: i32) -> (i32, i32) {
    %c0_i32 = arith.constant 0 : i32
    %c0_i32_0 = arith.constant 0 : i32
    %c0_i32_1 = arith.constant 0 : i32
    return %c0_i32, %c0_i32_0 : i32, i32
  }
  func.func @transform_8(%arg0: i32) -> (i32, i32, i32) {
    %c0_i32 = arith.constant 0 : i32
    %c0_i32_0 = arith.constant 0 : i32
    %c0_i32_1 = arith.constant 0 : i32
    return %arg0, %c0_i32, %c0_i32_0 : i32, i32, i32
  }
}

</mosaic_0001>

<llo_original>
// kernel: tpu_custom_call.1
$region0: #{tpu_custom_call.1}
  #allocation0 [shape = 'u32[]', space=smem, size = 0x4, offset = 0x4, fixed_abs, tag = 'smem constant byte address 0x4 - core index']
  #allocation1 [shape = 'u32[144,128]{1,0:T(1,128)}', space=vmem, size = 0x12000, scoped, tag = 'internal scratch']
  #allocation2 [shape = 'f32[2,8,512]{2,1,0:T(8,128)}', space=vmem, size = 0x8000, scoped, tag = 'scratch operand']
  #allocation3 [shape = 'f32[2,4,512]{2,1,0:T(4,128)}', space=vmem, size = 0x4000, scoped, tag = 'scratch operand']
  #allocation4 [shape = 'f32[72,512]{1,0:T(8,128)}', space=vmem, size = 0x24000, scoped, tag = 'scratch operand']
  #allocation5 [shape = 'f32[36,512]{1,0:T(8,128)}', space=vmem, size = 0x14000, scoped, tag = 'scratch operand']
  %s0 = inlined_call_operand.vmem [shape: f32[2,4,64], index: 0, kind: input, shape index: {}]
  %s1 = inlined_call_operand.hbm [shape: f32[2,4,256], index: 1, kind: input, shape index: {}]
  %s2 = inlined_call_operand.vmem [shape: f32[2,256], index: 2, kind: input, shape index: {}]
  %s3 = inlined_call_operand.hbm [shape: f32[64,256], index: 3, kind: input, shape index: {}]
  %s4 = inlined_call_operand.vmem [shape: f32[4,72], index: 4, kind: input, shape index: {}]
  %s5 = inlined_call_operand.vmem [shape: f32[4,1], index: 5, kind: input, shape index: {}]
  %s6 = inlined_call_operand.vmem [shape: f32[4,36], index: 6, kind: input, shape index: {}]
  %s7 = inlined_call_operand.vmem [shape: f32[4,1], index: 7, kind: input, shape index: {}]
  %s8 = inlined_call_operand.hbm [shape: f32[2,4,256], index: 8, kind: output, shape index: {}]
  %s9 = sld [smem:[#allocation0]]
  $region50: #{tpu_custom_call.1} parent=0
    _
  %s11 = ssub.s32 1, %s9
  %s12 = scalar_select 0, %s11, %s9
  $region1: #{tpu_custom_call.1} parent=0
    #allocation6 [shape = 'u8[8192]{0}', space=vmem, size = 0x2000, scoped, tag = 'input window, operand 1, single buffered']
    #allocation7 [shape = 's32[1]{0}', space=sflag, size = 0x4, scoped, tag = 'scoped memory for tpu_custom_call.1']
    #allocation8 [shape = 's32[1]{0}', space=sflag, size = 0x4, scoped, tag = 'scoped memory for tpu_custom_call.1']
    #allocation9 [shape = 'u8[65536]{0}', space=vmem, size = 0x10000, scoped, tag = 'input window, operand 3, single buffered']
    #allocation10 [shape = 's32[1]{0}', space=sflag, size = 0x4, scoped, tag = 'scoped memory for tpu_custom_call.1']
    #allocation11 [shape = 'u8[8192]{0}', space=vmem, size = 0x2000, scoped, tag = 'output window, operand 0, single buffered']
    %13 = vsyncpa [#allocation7], 0
    %14 = vsyncpa [#allocation10], 0
    %15 = vsyncpa [#allocation8], 0
    // Predicated region
    $region2: #{tpu_custom_call.1} parent=1 // pred_check
      _
    $region3: #{tpu_custom_call.1} parent=1 // pred_check_branch
      %17 = sbr.rel (0) target = $region5
    $region4: #{tpu_custom_call.1} parent=1 // pred_region
      _
    $region5: #{tpu_custom_call.1} parent=1 // pred_fallthru
      _
    // Predicated region
    $region6: #{tpu_custom_call.1} parent=1 // pred_check
      _
    $region7: #{tpu_custom_call.1} parent=1 // pred_check_branch
      %19 = sbr.rel (0) target = $region9
    $region8: #{tpu_custom_call.1} parent=1 // pred_region
      %s21 = ssub.s32 256, 256
      %22 = vsyncadd [#allocation7], %s21
      %s23 = sshll.u32 [#allocation6], 4
      %s24 = int_to_ptr.vmem [resolvable:$true] %s23
      %29 = dma.hbm_to_vmem [thread:$0]  %s1, 256, %s24, [#allocation7], 128, 128, 8
    $region9: #{tpu_custom_call.1} parent=1 // pred_fallthru
      _
    // Predicated region
    $region10: #{tpu_custom_call.1} parent=1 // pred_check
      _
    $region11: #{tpu_custom_call.1} parent=1 // pred_check_branch
      %31 = sbr.rel (0) target = $region13
    $region12: #{tpu_custom_call.1} parent=1 // pred_region
      _
    $region13: #{tpu_custom_call.1} parent=1 // pred_fallthru
      _
    // Predicated region
    $region14: #{tpu_custom_call.1} parent=1 // pred_check
      _
    $region15: #{tpu_custom_call.1} parent=1 // pred_check_branch
      %33 = sbr.rel (0) target = $region17
    $region16: #{tpu_custom_call.1} parent=1 // pred_region
      %s35 = ssub.s32 2048, 2048
      %36 = vsyncadd [#allocation10], %s35
      %s37 = sshll.u32 [#allocation9], 4
      %s38 = int_to_ptr.vmem [resolvable:$true] %s37
      %43 = dma.hbm_to_vmem [thread:$0]  %s3, 2048, %s38, [#allocation10], 256, 256, 16
    $region17: #{tpu_custom_call.1} parent=1 // pred_fallthru
      _
    // Predicated region
    $region18: #{tpu_custom_call.1} parent=1 // pred_check
      _
    $region19: #{tpu_custom_call.1} parent=1 // pred_check_branch
      %45 = sbr.rel (0) target = $region21
    $region20: #{tpu_custom_call.1} parent=1 // pred_region
      _
    $region21: #{tpu_custom_call.1} parent=1 // pred_fallthru
      _
    // Predicated region
    $region22: #{tpu_custom_call.1} parent=1 // pred_check
      _
    $region23: #{tpu_custom_call.1} parent=1 // pred_check_branch
      %47 = sbr.rel (0) target = $region25
    $region24: #{tpu_custom_call.1} parent=1 // pred_region
      _
    $region25: #{tpu_custom_call.1} parent=1 // pred_fallthru
      _
    // Predicated region
    $region26: #{tpu_custom_call.1} parent=1 // pred_check
      _
    $region27: #{tpu_custom_call.1} parent=1 // pred_check_branch
      %49 = sbr.rel (0) target = $region29
    $region28: #{tpu_custom_call.1} parent=1 // pred_region
      _
    $region29: #{tpu_custom_call.1} parent=1 // pred_fallthru
      _
    // Predicated region
    $region30: #{tpu_custom_call.1} parent=1 // pred_check
      _
    $region31: #{tpu_custom_call.1} parent=1 // pred_check_branch
      %51 = sbr.rel (0) target = $region33
    $region32: #{tpu_custom_call.1} parent=1 // pred_region
      _
    $region33: #{tpu_custom_call.1} parent=1 // pred_fallthru
      _
    // Predicated region
    $region34: #{tpu_custom_call.1} parent=1 // pred_check
      _
    $region35: #{tpu_custom_call.1} parent=1 // pred_check_branch
      %53 = sbr.rel (0) target = $region37
    $region36: #{tpu_custom_call.1} parent=1 // pred_region
      %54 = dma.done [#allocation7], 256
    $region37: #{tpu_custom_call.1} parent=1 // pred_fallthru
      _
    // Predicated region
    $region38: #{tpu_custom_call.1} parent=1 // pred_check
      _
    $region39: #{tpu_custom_call.1} parent=1 // pred_check_branch
      %56 = sbr.rel (0) target = $region41
    $region40: #{tpu_custom_call.1} parent=1 // pred_region
      %57 = dma.done [#allocation10], 2048
    $region41: #{tpu_custom_call.1} parent=1 // pred_fallthru
      _
    %v58 = vld [vmem:[%s2] ss:$2 sm:$0x3]
    %s59 = scalar_lea.vmem %s2, 1
    %v60 = vld [vmem:[%s59] ss:$2 sm:$0x3]
    %vm61 = vcmask 1048440
    %62 = vst.msk [vmem:[#allocation2] sm:$0xff] %vm61, 0.0
    %vm63 = vcmask 138240
    %64 = vst.msk [vmem:[#allocation2 + $0x18] sm:$0xff] %vm63, 0.0
    %vm65 = vcmask 1044344
    %66 = vst.msk [vmem:[#allocation3] sm:$0xf] %vm65, 0.0
    %vm67 = vcmask 134144
    %68 = vst.msk [vmem:[#allocation3 + $0xc] sm:$0xf] %vm67, 0.0
    %s69 = scalar_lea.vmem [#allocation2], 32
    %70 = vst.msk [vmem:[%s69] sm:$0xff] %vm61, 0.0
    %71 = vst.msk [vmem:[%s69 + $0x18] sm:$0xff] %vm63, 0.0
    %s72 = scalar_lea.vmem [#allocation3], 16
    %73 = vst.msk [vmem:[%s72] sm:$0xf] %vm65, 0.0
    %74 = vst.msk [vmem:[%s72 + $0xc] sm:$0xf] %vm67, 0.0
    %v75 = vld [vmem:[%s0] sm:$0xf]
    %v76 = vld [vmem:[%s0 + $0x4] sm:$0xf]
    %v77 = vld [vmem:[#allocation9] sm:$0xff]
    %v78 = vld [vmem:[#allocation9 + $0x8] sm:$0xff]
    %v79 = vld [vmem:[#allocation9 + $0x10] sm:$0xff]
    %v80 = vld [vmem:[#allocation9 + $0x18] sm:$0xff]
    %v81 = vld [vmem:[#allocation9 + $0x20] sm:$0xff]
    %v82 = vld [vmem:[#allocation9 + $0x28] sm:$0xff]
    %v83 = vld [vmem:[#allocation9 + $0x30] sm:$0xff]
    %v84 = vld [vmem:[#allocation9 + $0x38] sm:$0xff]
    %v85 = vld [vmem:[#allocation9 + $0x40] sm:$0xff]
    %v86 = vld [vmem:[#allocation9 + $0x48] sm:$0xff]
    %v87 = vld [vmem:[#allocation9 + $0x50] sm:$0xff]
    %v88 = vld [vmem:[#allocation9 + $0x58] sm:$0xff]
    %v89 = vld [vmem:[#allocation9 + $0x60] sm:$0xff]
    %v90 = vld [vmem:[#allocation9 + $0x68] sm:$0xff]
    %v91 = vld [vmem:[#allocation9 + $0x70] sm:$0xff]
    %v92 = vld [vmem:[#allocation9 + $0x78] sm:$0xff]
    %v95 = vcombine.low %v75, %v76
    %vm96 = vcmask 523264
    %v97 = vsel %vm96, %v95, 0
    %99 = vmatprep.subr.mxu0 %v78
    %100 = vmatpush1.msra.mxu0 %v77
    %101 = vmatprep.subr.mxu0 %v80
    %102 = vmatpush1.msra.mxu0 %v79
    %103 = vmatprep.subr.mxu0 %v82
    %104 = vmatpush1.msra.mxu0 %v81
    %105 = vmatprep.subr.mxu0 %v84
    %106 = vmatpush1.msra.mxu0 %v83
    %107 = vmatprep.subr.mxu0 %v86
    %108 = vmatpush1.msra.mxu0 %v85
    %109 = vmatprep.subr.mxu0 %v88
    %110 = vmatpush1.msra.mxu0 %v87
    %111 = vmatprep.subr.mxu0 %v90
    %112 = vmatpush1.msra.mxu0 %v89
    %113 = vmatprep.subr.mxu0 %v92
    %114 = vmatpush1.msra.mxu0 %v91
    %115 = vmatprep.subr.mxu0 0.0
    %116 = vmatpush1.msra.mxu0 0.0
    %117 = vmatprep.subr.mxu0 0.0
    %118 = vmatpush1.msra.mxu0 0.0
    %119 = vmatprep.subr.mxu0 0.0
    %120 = vmatpush1.msra.mxu0 0.0
    %121 = vmatprep.subr.mxu0 0.0
    %122 = vmatpush1.msra.mxu0 0.0
    %123 = vmatprep.subr.mxu0 0.0
    %124 = vmatpush1.msra.mxu0 0.0
    %125 = vmatprep.subr.mxu0 0.0
    %126 = vmatpush1.msra.mxu0 0.0
    %127 = vmatprep.subr.mxu0 0.0
    %128 = vmatpush1.msra.mxu0 0.0
    %129 = vmatprep.subr.mxu0 0.0
    %130 = vmatpush1.msra.mxu0 0.0
    %131 = vmatprep.subr.mxu0 0.0
    %132 = vmatpush1.msra.mxu0 0.0
    %133 = vmatprep.subr.mxu0 0.0
    %134 = vmatpush1.msra.mxu0 0.0
    %135 = vmatprep.subr.mxu0 0.0
    %136 = vmatpush1.msra.mxu0 0.0
    %137 = vmatprep.subr.mxu0 0.0
    %138 = vmatpush1.msra.mxu0 0.0
    %139 = vmatprep.subr.mxu0 0.0
    %140 = vmatpush1.msra.mxu0 0.0
    %141 = vmatprep.subr.mxu0 0.0
    %142 = vmatpush1.msra.mxu0 0.0
    %143 = vmatprep.subr.mxu0 0.0
    %144 = vmatpush1.msra.mxu0 0.0
    %145 = vmatprep.subr.mxu0 0.0
    %146 = vmatpush1.msra.mxu0 0.0
    %147 = vmatprep.subr.mxu0 0.0
    %148 = vmatpush1.msra.mxu0 0.0
    %149 = vmatprep.subr.mxu0 0.0
    %150 = vmatpush1.msra.mxu0 0.0
    %151 = vmatprep.subr.mxu0 0.0
    %152 = vmatpush1.msra.mxu0 0.0
    %153 = vmatprep.subr.mxu0 0.0
    %154 = vmatpush1.msra.mxu0 0.0
    %155 = vmatprep.subr.mxu0 0.0
    %156 = vmatpush1.msra.mxu0 0.0
    %157 = vmatprep.subr.mxu0 0.0
    %158 = vmatpush1.msra.mxu0 0.0
    %159 = vmatprep.subr.mxu0 0.0
    %160 = vmatpush1.msra.mxu0 0.0
    %161 = vmatprep.subr.mxu0 0.0
    %162 = vmatpush1.msra.mxu0 0.0
    %163 = vmatprep.mubr.f32.mxu0 0.0
    %164 = vmatmul.mubr.f32.gmra.mrb[0].mxu0 %v97
    %v165 = vpop.f32.mrb[0].mxu0
    %v166 = vadd.f32 0.0, %v165
    %v167 = vpop.f32.mrb[0].mxu0
    %v168 = vadd.f32 0.0, %v167
    %169 = vdwg.mxu0
    %v170 = vld [vmem:[#allocation6] sm:$0xff]
    %v172 = vcombine.high %v170, %v170
    %v176 = vrot.slane %v166, 4
    %v177 = vrot.slane %v168, 4
    %vm180 = vcmask 1043456
    %v181 = vsel %vm180, %v170, %v176
    %v182 = vsel %vm180, %v172, %v177
    %183 = vst [vmem:[#allocation2 + $0x8] sm:$0xff] %v181
    %184 = vst [vmem:[#allocation2 + $0x10] sm:$0xff] %v182
    %s185 = scalar_lea.vmem [#allocation6], 8
    %v186 = vld [vmem:[%s185] sm:$0xff]
    %v188 = vcombine.high %v186, %v186
    %v190 = vsel %vm180, %v186, %v166
    %v191 = vsel %vm180, %v188, %v168
    %192 = vst [vmem:[%s69 + $0x8] sm:$0xff] %v190
    %193 = vst [vmem:[%s69 + $0x10] sm:$0xff] %v191
    %v194 = vld [vmem:[#allocation2] sm:$0xff]
    %v195 = vld [vmem:[#allocation2 + $0x8] sm:$0xff]
    %v196 = vld [vmem:[#allocation2 + $0x10] sm:$0xff]
    %v198 = vlaneseq
    %v199 = vshrl.u32 %v198, 7
    %v200 = vsub.s32 0, %v199
    %v201 = vrot.slane %v58, %v200
    %v202 = vlaneseq
    %v203 = vshrl.u32 %v202, 7
    %v204 = vsub.s32 1, %v203
    %v205 = vrot.slane %v58, %v204
    %206 = vrot.lane.b32.xlu0 %v201, 111
    %v207 = vpop.permute.xlu0 %206
    %208 = vrot.lane.b32.xlu0 %v205, 111
    %v209 = vpop.permute.xlu0 %208
    %vm210 = vcmask 908288
    %v211 = vsel %vm210, %v207, %v209
    %v215 = vmul.f32 %v194, %v207
    %v216 = vmul.f32 %v195, %v211
    %v217 = vmul.f32 %v196, %v209
    %221 = vrot.lane.b32.xlu0 %v215, 17
    %v222 = vpop.permute.xlu0 %221
    %223 = vrot.lane.b32.xlu0 %v216, 17
    %v224 = vpop.permute.xlu0 %223
    %225 = vrot.lane.b32.xlu0 %v217, 17
    %v226 = vpop.permute.xlu0 %225
    %v227 = vsel %vm63, %v222, %v224
    %v228 = vsel %vm63, %v224, %v226
    %231 = vst [vmem:[#allocation4] sm:$0xff] %v227
    %232 = vst [vmem:[#allocation4 + $0x8] sm:$0xff] %v228
    %v233 = vld [vmem:[#allocation2] sm:$0xff]
    %v234 = vld [vmem:[#allocation2 + $0x8] sm:$0xff]
    %v235 = vld [vmem:[#allocation2 + $0x10] sm:$0xff]
    %239 = vrot.lane.b32.xlu0 %v233, 16
    %v240 = vpop.permute.xlu0 %239
    %241 = vrot.lane.b32.xlu0 %v234, 16
    %v242 = vpop.permute.xlu0 %241
    %243 = vrot.lane.b32.xlu0 %v235, 16
    %v244 = vpop.permute.xlu0 %243
    %vm245 = vcmask 130048
    %v246 = vsel %vm245, %v240, %v242
    %v247 = vsel %vm245, %v242, %v244
    %250 = vst [vmem:[#allocation4 + $0x20] sm:$0xff] %v246
    %251 = vst [vmem:[#allocation4 + $0x28] sm:$0xff] %v247
    %v252 = vld [vmem:[#allocation2] sm:$0xff]
    %v253 = vld [vmem:[#allocation2 + $0x8] sm:$0xff]
    %v254 = vld [vmem:[#allocation2 + $0x10] sm:$0xff]
    %v256 = vlaneseq
    %v257 = vshrl.u32 %v256, 7
    %v258 = vsub.s32 0, %v257
    %v259 = vrot.slane %v60, %v258
    %v260 = vlaneseq
    %v261 = vshrl.u32 %v260, 7
    %v262 = vsub.s32 1, %v261
    %v263 = vrot.slane %v60, %v262
    %264 = vrot.lane.b32.xlu0 %v259, 113
    %v265 = vpop.permute.xlu0 %264
    %266 = vrot.lane.b32.xlu0 %v263, 113
    %v267 = vpop.permute.xlu0 %266
    %vm268 = vcmask 924672
    %v269 = vsel %vm268, %v265, %v267
    %v273 = vmul.f32 %v252, %v265
    %v274 = vmul.f32 %v253, %v269
    %v275 = vmul.f32 %v254, %v267
    %279 = vrot.lane.b32.xlu0 %v273, 15
    %v280 = vpop.permute.xlu0 %279
    %281 = vrot.lane.b32.xlu0 %v274, 15
    %v282 = vpop.permute.xlu0 %281
    %283 = vrot.lane.b32.xlu0 %v275, 15
    %v284 = vpop.permute.xlu0 %283
    %vm285 = vcmask 121856
    %v286 = vsel %vm285, %v280, %v282
    %v287 = vsel %vm285, %v282, %v284
    %290 = vst [vmem:[#allocation4 + $0x40] sm:$0xff] %v286
    %291 = vst [vmem:[#allocation4 + $0x48] sm:$0xff] %v287
    %v292 = vld [vmem:[#allocation2] sm:$0xff]
    %v293 = vld [vmem:[#allocation2 + $0x8] sm:$0xff]
    %v294 = vld [vmem:[#allocation2 + $0x10] sm:$0xff]
    %295 = vrot.lane.b32.xlu0 %v201, 127
    %v296 = vpop.permute.xlu0 %295
    %297 = vrot.lane.b32.xlu0 %v205, 127
    %v298 = vpop.permute.xlu0 %297
    %vm299 = vcmask 1039360
    %v300 = vsel %vm299, %v296, %v298
    %v304 = vmul.f32 %v292, %v296
    %v305 = vmul.f32 %v293, %v300
    %v306 = vmul.f32 %v294, %v298
    %310 = vrot.lane.b32.xlu0 %v304, 1
    %v311 = vpop.permute.xlu0 %310
    %312 = vrot.lane.b32.xlu0 %v305, 1
    %v313 = vpop.permute.xlu0 %312
    %314 = vrot.lane.b32.xlu0 %v306, 1
    %v315 = vpop.permute.xlu0 %314
    %vm316 = vcmask 7168
    %v317 = vsel %vm316, %v311, %v313
    %v318 = vsel %vm316, %v313, %v315
    %321 = vst [vmem:[#allocation4 + $0x60] sm:$0xff] %v317
    %322 = vst [vmem:[#allocation4 + $0x68] sm:$0xff] %v318
    %v323 = vld [vmem:[#allocation2 + $0x8] sm:$0xff]
    %v324 = vld [vmem:[#allocation2 + $0x10] sm:$0xff]
    %325 = vst [vmem:[#allocation4 + $0x80] sm:$0xff] %v323
    %326 = vst [vmem:[#allocation4 + $0x88] sm:$0xff] %v324
    %v327 = vld [vmem:[#allocation2 + $0x8] sm:$0xff]
    %v328 = vld [vmem:[#allocation2 + $0x10] sm:$0xff]
    %v329 = vld [vmem:[#allocation2 + $0x18] sm:$0xff]
    %330 = vrot.lane.b32.xlu0 %v259, 1
    %v331 = vpop.permute.xlu0 %330
    %332 = vrot.lane.b32.xlu0 %v263, 1
    %v333 = vpop.permute.xlu0 %332
    %v334 = vsel %vm316, %v331, %v333
    %v338 = vmul.f32 %v327, %v331
    %v339 = vmul.f32 %v328, %v334
    %v340 = vmul.f32 %v329, %v333
    %344 = vrot.lane.b32.xlu0 %v338, 127
    %v345 = vpop.permute.xlu0 %344
    %346 = vrot.lane.b32.xlu0 %v339, 127
    %v347 = vpop.permute.xlu0 %346
    %348 = vrot.lane.b32.xlu0 %v340, 127
    %v349 = vpop.permute.xlu0 %348
    %v350 = vsel %vm299, %v345, %v347
    %v351 = vsel %vm299, %v347, %v349
    %354 = vst [vmem:[#allocation4 + $0xa0] sm:$0xff] %v350
    %355 = vst [vmem:[#allocation4 + $0xa8] sm:$0xff] %v351
    %v356 = vld [vmem:[#allocation2 + $0x8] sm:$0xff]
    %v357 = vld [vmem:[#allocation2 + $0x10] sm:$0xff]
    %v358 = vld [vmem:[#allocation2 + $0x18] sm:$0xff]
    %359 = vrot.lane.b32.xlu0 %v201, 15
    %v360 = vpop.permute.xlu0 %359
    %361 = vrot.lane.b32.xlu0 %v205, 15
    %v362 = vpop.permute.xlu0 %361
    %v363 = vsel %vm285, %v360, %v362
    %v367 = vmul.f32 %v356, %v360
    %v368 = vmul.f32 %v357, %v363
    %v369 = vmul.f32 %v358, %v362
    %373 = vrot.lane.b32.xlu0 %v367, 113
    %v374 = vpop.permute.xlu0 %373
    %375 = vrot.lane.b32.xlu0 %v368, 113
    %v376 = vpop.permute.xlu0 %375
    %377 = vrot.lane.b32.xlu0 %v369, 113
    %v378 = vpop.permute.xlu0 %377
    %v379 = vsel %vm268, %v374, %v376
    %v380 = vsel %vm268, %v376, %v378
    %383 = vst [vmem:[#allocation4 + $0xc0] sm:$0xff] %v379
    %384 = vst [vmem:[#allocation4 + $0xc8] sm:$0xff] %v380
    %v385 = vld [vmem:[#allocation2 + $0x8] sm:$0xff]
    %v386 = vld [vmem:[#allocation2 + $0x10] sm:$0xff]
    %v387 = vld [vmem:[#allocation2 + $0x18] sm:$0xff]
    %391 = vrot.lane.b32.xlu0 %v385, 112
    %v392 = vpop.permute.xlu0 %391
    %393 = vrot.lane.b32.xlu0 %v386, 112
    %v394 = vpop.permute.xlu0 %393
    %395 = vrot.lane.b32.xlu0 %v387, 112
    %v396 = vpop.permute.xlu0 %395
    %vm397 = vcmask 916480
    %v398 = vsel %vm397, %v392, %v394
    %v399 = vsel %vm397, %v394, %v396
    %402 = vst [vmem:[#allocation4 + $0xe0] sm:$0xff] %v398
    %403 = vst [vmem:[#allocation4 + $0xe8] sm:$0xff] %v399
    %v404 = vld [vmem:[#allocation2 + $0x8] sm:$0xff]
    %v405 = vld [vmem:[#allocation2 + $0x10] sm:$0xff]
    %v406 = vld [vmem:[#allocation2 + $0x18] sm:$0xff]
    %407 = vrot.lane.b32.xlu0 %v259, 17
    %v408 = vpop.permute.xlu0 %407
    %409 = vrot.lane.b32.xlu0 %v263, 17
    %v410 = vpop.permute.xlu0 %409
    %v411 = vsel %vm63, %v408, %v410
    %v415 = vmul.f32 %v404, %v408
    %v416 = vmul.f32 %v405, %v411
    %v417 = vmul.f32 %v406, %v410
    %421 = vrot.lane.b32.xlu0 %v415, 111
    %v422 = vpop.permute.xlu0 %421
    %423 = vrot.lane.b32.xlu0 %v416, 111
    %v424 = vpop.permute.xlu0 %423
    %425 = vrot.lane.b32.xlu0 %v417, 111
    %v426 = vpop.permute.xlu0 %425
    %v427 = vsel %vm210, %v422, %v424
    %v428 = vsel %vm210, %v424, %v426
    %431 = vst [vmem:[#allocation4 + $0x100] sm:$0xff] %v427
    %432 = vst [vmem:[#allocation4 + $0x108] sm:$0xff] %v428
    %v433 = vld [vmem:[%s69] sm:$0xff]
    %v434 = vld [vmem:[%s69 + $0x8] sm:$0xff]
    %v435 = vld [vmem:[%s69 + $0x10] sm:$0xff]
    %v436 = vmul.f32 %v433, %v207
    %v437 = vmul.f32 %v434, %v211
    %v438 = vmul.f32 %v435, %v209
    %442 = vrot.lane.b32.xlu0 %v436, 17
    %v443 = vpop.permute.xlu0 %442
    %444 = vrot.lane.b32.xlu0 %v437, 17
    %v445 = vpop.permute.xlu0 %444
    %446 = vrot.lane.b32.xlu0 %v438, 17
    %v447 = vpop.permute.xlu0 %446
    %v448 = vsel %vm63, %v443, %v445
    %v449 = vsel %vm63, %v445, %v447
    %452 = vst [vmem:[#allocation4 + $0x10] sm:$0xff] %v448
    %453 = vst [vmem:[#allocation4 + $0x18] sm:$0xff] %v449
    %v454 = vld [vmem:[%s69] sm:$0xff]
    %v455 = vld [vmem:[%s69 + $0x8] sm:$0xff]
    %v456 = vld [vmem:[%s69 + $0x10] sm:$0xff]
    %460 = vrot.lane.b32.xlu0 %v454, 16
    %v461 = vpop.permute.xlu0 %460
    %462 = vrot.lane.b32.xlu0 %v455, 16
    %v463 = vpop.permute.xlu0 %462
    %464 = vrot.lane.b32.xlu0 %v456, 16
    %v465 = vpop.permute.xlu0 %464
    %v466 = vsel %vm245, %v461, %v463
    %v467 = vsel %vm245, %v463, %v465
    %470 = vst [vmem:[#allocation4 + $0x30] sm:$0xff] %v466
    %471 = vst [vmem:[#allocation4 + $0x38] sm:$0xff] %v467
    %v472 = vld [vmem:[%s69] sm:$0xff]
    %v473 = vld [vmem:[%s69 + $0x8] sm:$0xff]
    %v474 = vld [vmem:[%s69 + $0x10] sm:$0xff]
    %v475 = vmul.f32 %v472, %v265
    %v476 = vmul.f32 %v473, %v269
    %v477 = vmul.f32 %v474, %v267
    %481 = vrot.lane.b32.xlu0 %v475, 15
    %v482 = vpop.permute.xlu0 %481
    %483 = vrot.lane.b32.xlu0 %v476, 15
    %v484 = vpop.permute.xlu0 %483
    %485 = vrot.lane.b32.xlu0 %v477, 15
    %v486 = vpop.permute.xlu0 %485
    %v487 = vsel %vm285, %v482, %v484
    %v488 = vsel %vm285, %v484, %v486
    %491 = vst [vmem:[#allocation4 + $0x50] sm:$0xff] %v487
    %492 = vst [vmem:[#allocation4 + $0x58] sm:$0xff] %v488
    %v493 = vld [vmem:[%s69] sm:$0xff]
    %v494 = vld [vmem:[%s69 + $0x8] sm:$0xff]
    %v495 = vld [vmem:[%s69 + $0x10] sm:$0xff]
    %v496 = vmul.f32 %v493, %v296
    %v497 = vmul.f32 %v494, %v300
    %v498 = vmul.f32 %v495, %v298
    %502 = vrot.lane.b32.xlu0 %v496, 1
    %v503 = vpop.permute.xlu0 %502
    %504 = vrot.lane.b32.xlu0 %v497, 1
    %v505 = vpop.permute.xlu0 %504
    %506 = vrot.lane.b32.xlu0 %v498, 1
    %v507 = vpop.permute.xlu0 %506
    %v508 = vsel %vm316, %v503, %v505
    %v509 = vsel %vm316, %v505, %v507
    %512 = vst [vmem:[#allocation4 + $0x70] sm:$0xff] %v508
    %513 = vst [vmem:[#allocation4 + $0x78] sm:$0xff] %v509
    %v514 = vld [vmem:[%s69 + $0x8] sm:$0xff]
    %v515 = vld [vmem:[%s69 + $0x10] sm:$0xff]
    %516 = vst [vmem:[#allocation4 + $0x90] sm:$0xff] %v514
    %517 = vst [vmem:[#allocation4 + $0x98] sm:$0xff] %v515
    %v518 = vld [vmem:[%s69 + $0x8] sm:$0xff]
    %v519 = vld [vmem:[%s69 + $0x10] sm:$0xff]
    %v520 = vld [vmem:[%s69 + $0x18] sm:$0xff]
    %v521 = vmul.f32 %v518, %v331
    %v522 = vmul.f32 %v519, %v334
    %v523 = vmul.f32 %v520, %v333
    %527 = vrot.lane.b32.xlu0 %v521, 127
    %v528 = vpop.permute.xlu0 %527
    %529 = vrot.lane.b32.xlu0 %v522, 127
    %v530 = vpop.permute.xlu0 %529
    %531 = vrot.lane.b32.xlu0 %v523, 127
    %v532 = vpop.permute.xlu0 %531
    %v533 = vsel %vm299, %v528, %v530
    %v534 = vsel %vm299, %v530, %v532
    %537 = vst [vmem:[#allocation4 + $0xb0] sm:$0xff] %v533
    %538 = vst [vmem:[#allocation4 + $0xb8] sm:$0xff] %v534
    %v539 = vld [vmem:[%s69 + $0x8] sm:$0xff]
    %v540 = vld [vmem:[%s69 + $0x10] sm:$0xff]
    %v541 = vld [vmem:[%s69 + $0x18] sm:$0xff]
    %v542 = vmul.f32 %v539, %v360
    %v543 = vmul.f32 %v540, %v363
    %v544 = vmul.f32 %v541, %v362
    %548 = vrot.lane.b32.xlu0 %v542, 113
    %v549 = vpop.permute.xlu0 %548
    %550 = vrot.lane.b32.xlu0 %v543, 113
    %v551 = vpop.permute.xlu0 %550
    %552 = vrot.lane.b32.xlu0 %v544, 113
    %v553 = vpop.permute.xlu0 %552
    %v554 = vsel %vm268, %v549, %v551
    %v555 = vsel %vm268, %v551, %v553
    %558 = vst [vmem:[#allocation4 + $0xd0] sm:$0xff] %v554
    %559 = vst [vmem:[#allocation4 + $0xd8] sm:$0xff] %v555
    %v560 = vld [vmem:[%s69 + $0x8] sm:$0xff]
    %v561 = vld [vmem:[%s69 + $0x10] sm:$0xff]
    %v562 = vld [vmem:[%s69 + $0x18] sm:$0xff]
    %566 = vrot.lane.b32.xlu0 %v560, 112
    %v567 = vpop.permute.xlu0 %566
    %568 = vrot.lane.b32.xlu0 %v561, 112
    %v569 = vpop.permute.xlu0 %568
    %570 = vrot.lane.b32.xlu0 %v562, 112
    %v571 = vpop.permute.xlu0 %570
    %v572 = vsel %vm397, %v567, %v569
    %v573 = vsel %vm397, %v569, %v571
    %576 = vst [vmem:[#allocation4 + $0xf0] sm:$0xff] %v572
    %577 = vst [vmem:[#allocation4 + $0xf8] sm:$0xff] %v573
    %v578 = vld [vmem:[%s69 + $0x8] sm:$0xff]
    %v579 = vld [vmem:[%s69 + $0x10] sm:$0xff]
    %v580 = vld [vmem:[%s69 + $0x18] sm:$0xff]
    %v581 = vmul.f32 %v578, %v408
    %v582 = vmul.f32 %v579, %v411
    %v583 = vmul.f32 %v580, %v410
    %587 = vrot.lane.b32.xlu0 %v581, 111
    %v588 = vpop.permute.xlu0 %587
    %589 = vrot.lane.b32.xlu0 %v582, 111
    %v590 = vpop.permute.xlu0 %589
    %591 = vrot.lane.b32.xlu0 %v583, 111
    %v592 = vpop.permute.xlu0 %591
    %v593 = vsel %vm210, %v588, %v590
    %v594 = vsel %vm210, %v590, %v592
    %597 = vst [vmem:[#allocation4 + $0x110] sm:$0xff] %v593
    %598 = vst [vmem:[#allocation4 + $0x118] sm:$0xff] %v594
    %v599 = vld [vmem:[%s4] sm:$0xf]
    %v600 = vld [vmem:[#allocation4] sm:$0xff]
    %v601 = vld [vmem:[#allocation4 + $0x8] sm:$0xff]
    %v602 = vld [vmem:[#allocation4 + $0x10] sm:$0xff]
    %v603 = vld [vmem:[#allocation4 + $0x18] sm:$0xff]
    %v604 = vld [vmem:[#allocation4 + $0x20] sm:$0xff]
    %v605 = vld [vmem:[#allocation4 + $0x28] sm:$0xff]
    %v606 = vld [vmem:[#allocation4 + $0x30] sm:$0xff]
    %v607 = vld [vmem:[#allocation4 + $0x38] sm:$0xff]
    %v608 = vld [vmem:[#allocation4 + $0x40] sm:$0xff]
    %v609 = vld [vmem:[#allocation4 + $0x48] sm:$0xff]
    %v610 = vld [vmem:[#allocation4 + $0x50] sm:$0xff]
    %v611 = vld [vmem:[#allocation4 + $0x58] sm:$0xff]
    %v612 = vld [vmem:[#allocation4 + $0x60] sm:$0xff]
    %v613 = vld [vmem:[#allocation4 + $0x68] sm:$0xff]
    %v614 = vld [vmem:[#allocation4 + $0x70] sm:$0xff]
    %v615 = vld [vmem:[#allocation4 + $0x78] sm:$0xff]
    %v616 = vld [vmem:[#allocation4 + $0x80] sm:$0xff]
    %v617 = vld [vmem:[#allocation4 + $0x88] sm:$0xff]
    %v618 = vld [vmem:[#allocation4 + $0x90] sm:$0xff]
    %v619 = vld [vmem:[#allocation4 + $0x98] sm:$0xff]
    %v620 = vld [vmem:[#allocation4 + $0xa0] sm:$0xff]
    %v621 = vld [vmem:[#allocation4 + $0xa8] sm:$0xff]
    %v622 = vld [vmem:[#allocation4 + $0xb0] sm:$0xff]
    %v623 = vld [vmem:[#allocation4 + $0xb8] sm:$0xff]
    %v624 = vld [vmem:[#allocation4 + $0xc0] sm:$0xff]
    %v625 = vld [vmem:[#allocation4 + $0xc8] sm:$0xff]
    %v626 = vld [vmem:[#allocation4 + $0xd0] sm:$0xff]
    %v627 = vld [vmem:[#allocation4 + $0xd8] sm:$0xff]
    %v628 = vld [vmem:[#allocation4 + $0xe0] sm:$0xff]
    %v629 = vld [vmem:[#allocation4 + $0xe8] sm:$0xff]
    %v630 = vld [vmem:[#allocation4 + $0xf0] sm:$0xff]
    %v631 = vld [vmem:[#allocation4 + $0xf8] sm:$0xff]
    %v632 = vld [vmem:[#allocation4 + $0x100] sm:$0xff]
    %v633 = vld [vmem:[#allocation4 + $0x108] sm:$0xff]
    %v634 = vld [vmem:[#allocation4 + $0x110] sm:$0xff]
    %v635 = vld [vmem:[#allocation4 + $0x118] sm:$0xff]
    %v636 = vld [vmem:[%s5] sm:$0xf]
    %638 = vset.pattern.permute.xlu0 0
    %639 = vperm.xlu0 %638, %v636
    %v640 = vpop.permute.xlu0 %639
    %vm642 = vcmask 588800
    %v644 = vsel %vm642, %v599, 0
    %646 = vmatprep.subr.mxu0 %v601
    %647 = vmatpush1.msra.mxu0 %v600
    %648 = vmatprep.subr.mxu0 %v605
    %649 = vmatpush1.msra.mxu0 %v604
    %650 = vmatprep.subr.mxu0 %v609
    %651 = vmatpush1.msra.mxu0 %v608
    %652 = vmatprep.subr.mxu0 %v613
    %653 = vmatpush1.msra.mxu0 %v612
    %654 = vmatprep.subr.mxu0 %v617
    %655 = vmatpush1.msra.mxu0 %v616
    %656 = vmatprep.subr.mxu0 %v621
    %657 = vmatpush1.msra.mxu0 %v620
    %658 = vmatprep.subr.mxu0 %v625
    %659 = vmatpush1.msra.mxu0 %v624
    %660 = vmatprep.subr.mxu0 %v629
    %661 = vmatpush1.msra.mxu0 %v628
    %662 = vmatprep.subr.mxu0 %v633
    %663 = vmatpush1.msra.mxu0 %v632
    %664 = vmatprep.subr.mxu0 0.0
    %665 = vmatpush1.msra.mxu0 0.0
    %666 = vmatprep.subr.mxu0 0.0
    %667 = vmatpush1.msra.mxu0 0.0
    %668 = vmatprep.subr.mxu0 0.0
    %669 = vmatpush1.msra.mxu0 0.0
    %670 = vmatprep.subr.mxu0 0.0
    %671 = vmatpush1.msra.mxu0 0.0
    %672 = vmatprep.subr.mxu0 0.0
    %673 = vmatpush1.msra.mxu0 0.0
    %674 = vmatprep.subr.mxu0 0.0
    %675 = vmatpush1.msra.mxu0 0.0
    %676 = vmatprep.subr.mxu0 0.0
    %677 = vmatpush1.msra.mxu0 0.0
    %678 = vmatprep.subr.mxu0 0.0
    %679 = vmatpush1.msra.mxu0 0.0
    %680 = vmatprep.subr.mxu0 0.0
    %681 = vmatpush1.msra.mxu0 0.0
    %682 = vmatprep.subr.mxu0 0.0
    %683 = vmatpush1.msra.mxu0 0.0
    %684 = vmatprep.subr.mxu0 0.0
    %685 = vmatpush1.msra.mxu0 0.0
    %686 = vmatprep.subr.mxu0 0.0
    %687 = vmatpush1.msra.mxu0 0.0
    %688 = vmatprep.subr.mxu0 0.0
    %689 = vmatpush1.msra.mxu0 0.0
    %690 = vmatprep.subr.mxu0 0.0
    %691 = vmatpush1.msra.mxu0 0.0
    %692 = vmatprep.subr.mxu0 0.0
    %693 = vmatpush1.msra.mxu0 0.0
    %694 = vmatprep.subr.mxu0 0.0
    %695 = vmatpush1.msra.mxu0 0.0
    %696 = vmatprep.subr.mxu0 0.0
    %697 = vmatpush1.msra.mxu0 0.0
    %698 = vmatprep.subr.mxu0 0.0
    %699 = vmatpush1.msra.mxu0 0.0
    %700 = vmatprep.subr.mxu0 0.0
    %701 = vmatpush1.msra.mxu0 0.0
    %702 = vmatprep.subr.mxu0 0.0
    %703 = vmatpush1.msra.mxu0 0.0
    %704 = vmatprep.subr.mxu0 0.0
    %705 = vmatpush1.msra.mxu0 0.0
    %706 = vmatprep.subr.mxu0 0.0
    %707 = vmatpush1.msra.mxu0 0.0
    %708 = vmatprep.subr.mxu0 0.0
    %709 = vmatpush1.msra.mxu0 0.0
    %710 = vmatprep.mubr.f32.mxu0 0.0
    %711 = vmatmul.mubr.f32.gmra.mrb[0].mxu0 %v644
    %v712 = vpop.f32.mrb[0].mxu0
    %v713 = vadd.f32 %v640, %v712
    %v714 = vpop.f32.mrb[0].mxu0
    %v715 = vadd.f32 %v640, %v714
    %716 = vdwg.mxu0
    %717 = vmatprep.subr.mxu0 %v603
    %718 = vmatpush1.msra.mxu0 %v602
    %719 = vmatprep.subr.mxu0 %v607
    %720 = vmatpush1.msra.mxu0 %v606
    %721 = vmatprep.subr.mxu0 %v611
    %722 = vmatpush1.msra.mxu0 %v610
    %723 = vmatprep.subr.mxu0 %v615
    %724 = vmatpush1.msra.mxu0 %v614
    %725 = vmatprep.subr.mxu0 %v619
    %726 = vmatpush1.msra.mxu0 %v618
    %727 = vmatprep.subr.mxu0 %v623
    %728 = vmatpush1.msra.mxu0 %v622
    %729 = vmatprep.subr.mxu0 %v627
    %730 = vmatpush1.msra.mxu0 %v626
    %731 = vmatprep.subr.mxu0 %v631
    %732 = vmatpush1.msra.mxu0 %v630
    %733 = vmatprep.subr.mxu0 %v635
    %734 = vmatpush1.msra.mxu0 %v634
    %735 = vmatprep.subr.mxu0 0.0
    %736 = vmatpush1.msra.mxu0 0.0
    %737 = vmatprep.subr.mxu0 0.0
    %738 = vmatpush1.msra.mxu0 0.0
    %739 = vmatprep.subr.mxu0 0.0
    %740 = vmatpush1.msra.mxu0 0.0
    %741 = vmatprep.subr.mxu0 0.0
    %742 = vmatpush1.msra.mxu0 0.0
    %743 = vmatprep.subr.mxu0 0.0
    %744 = vmatpush1.msra.mxu0 0.0
    %745 = vmatprep.subr.mxu0 0.0
    %746 = vmatpush1.msra.mxu0 0.0
    %747 = vmatprep.subr.mxu0 0.0
    %748 = vmatpush1.msra.mxu0 0.0
    %749 = vmatprep.subr.mxu0 0.0
    %750 = vmatpush1.msra.mxu0 0.0
    %751 = vmatprep.subr.mxu0 0.0
    %752 = vmatpush1.msra.mxu0 0.0
    %753 = vmatprep.subr.mxu0 0.0
    %754 = vmatpush1.msra.mxu0 0.0
    %755 = vmatprep.subr.mxu0 0.0
    %756 = vmatpush1.msra.mxu0 0.0
    %757 = vmatprep.subr.mxu0 0.0
    %758 = vmatpush1.msra.mxu0 0.0
    %759 = vmatprep.subr.mxu0 0.0
    %760 = vmatpush1.msra.mxu0 0.0
    %761 = vmatprep.subr.mxu0 0.0
    %762 = vmatpush1.msra.mxu0 0.0
    %763 = vmatprep.subr.mxu0 0.0
    %764 = vmatpush1.msra.mxu0 0.0
    %765 = vmatprep.subr.mxu0 0.0
    %766 = vmatpush1.msra.mxu0 0.0
    %767 = vmatprep.subr.mxu0 0.0
    %768 = vmatpush1.msra.mxu0 0.0
    %769 = vmatprep.subr.mxu0 0.0
    %770 = vmatpush1.msra.mxu0 0.0
    %771 = vmatprep.subr.mxu0 0.0
    %772 = vmatpush1.msra.mxu0 0.0
    %773 = vmatprep.subr.mxu0 0.0
    %774 = vmatpush1.msra.mxu0 0.0
    %775 = vmatprep.subr.mxu0 0.0
    %776 = vmatpush1.msra.mxu0 0.0
    %777 = vmatprep.subr.mxu0 0.0
    %778 = vmatpush1.msra.mxu0 0.0
    %779 = vmatprep.subr.mxu0 0.0
    %780 = vmatpush1.msra.mxu0 0.0
    %781 = vmatprep.mubr.f32.mxu0 0.0
    %782 = vmatmul.mubr.f32.gmra.mrb[0].mxu0 %v644
    %v783 = vpop.f32.mrb[0].mxu0
    %v784 = vadd.f32 %v640, %v783
    %v785 = vpop.f32.mrb[0].mxu0
    %v786 = vadd.f32 %v640, %v785
    %787 = vdwg.mxu0
    %v788 = vsel %vm180, %v713, 0.0
    %v789 = vsel %vm180, %v715, 0.0
    %v790 = vadd.f32 %v788, %v789
    %791 = vadd.xlane.f32.xlu0 %v790
    %v792 = vpop.xlane.xlu0 %791
    %v793 = vrcp.pop 256.0
    %v794 = vmul.f32 %v792, %v793
    %v795 = vmul.f32 %v713, %v713
    %v796 = vmul.f32 %v715, %v715
    %v797 = vsel %vm180, %v795, 0.0
    %v798 = vsel %vm180, %v796, 0.0
    %v799 = vadd.f32 %v797, %v798
    %800 = vadd.xlane.f32.xlu0 %v799
    %v801 = vpop.xlane.xlu0 %800
    %v802 = vmul.f32 %v801, %v793
    %v803 = vmul.f32 %v794, %v794
    %v804 = vsub.f32 %v802, %v803
    %v805 = vmax.f32 %v804, 0.0
    %v806 = vsub.f32 %v713, %v794
    %v807 = vsub.f32 %v715, %v794
    %v808 = vadd.f32 %v805, 1e-05
    %v809 = vrsqrt.pop %v808
    %v810 = vmul.f32 %v806, %v809
    %v811 = vmul.f32 %v807, %v809
    %v812 = vmax.f32 %v810, 0.0
    %v813 = vmax.f32 %v811, 0.0
    %v814 = vsel %vm180, %v784, 0.0
    %v815 = vsel %vm180, %v786, 0.0
    %v816 = vadd.f32 %v814, %v815
    %817 = vadd.xlane.f32.xlu0 %v816
    %v818 = vpop.xlane.xlu0 %817
    %v819 = vmul.f32 %v818, %v793
    %v820 = vmul.f32 %v784, %v784
    %v821 = vmul.f32 %v786, %v786
    %v822 = vsel %vm180, %v820, 0.0
    %v823 = vsel %vm180, %v821, 0.0
    %v824 = vadd.f32 %v822, %v823
    %825 = vadd.xlane.f32.xlu0 %v824
    %v826 = vpop.xlane.xlu0 %825
    %v827 = vmul.f32 %v826, %v793
    %v828 = vmul.f32 %v819, %v819
    %v829 = vsub.f32 %v827, %v828
    %v830 = vmax.f32 %v829, 0.0
    %v831 = vsub.f32 %v784, %v819
    %v832 = vsub.f32 %v786, %v819
    %v833 = vadd.f32 %v830, 1e-05
    %v834 = vrsqrt.pop %v833
    %v835 = vmul.f32 %v831, %v834
    %v836 = vmul.f32 %v832, %v834
    %v837 = vmax.f32 %v835, 0.0
    %v838 = vmax.f32 %v836, 0.0
    %v841 = vcombine.low %v812, %v813
    %843 = vst [vmem:[#allocation3 + $0x4] sm:$0xff] %v841
    %v846 = vcombine.low %v837, %v838
    %848 = vst [vmem:[%s72 + $0x4] sm:$0xff] %v846
    %v849 = vld [vmem:[#allocation3] sm:$0xff]
    %v850 = vld [vmem:[#allocation3 + $0x8] sm:$0xf]
    %v851 = vcombine.low %v201, %v205
    %852 = vrot.lane.b32.xlu0 %v851, 111
    %v853 = vpop.permute.xlu0 %852
    %v854 = vrot.slane %v853, 4
    %v855 = vsel %vm210, %v854, %v853
    %v858 = vmul.f32 %v849, %v855
    %v859 = vmul.f32 %v850, %v854
    %v862 = vcombine.high %v858, %v858
    %863 = vrot.lane.b32.xlu0 %v858, 17
    %v864 = vpop.permute.xlu0 %863
    %865 = vrot.lane.b32.xlu0 %v862, 17
    %v866 = vpop.permute.xlu0 %865
    %867 = vrot.lane.b32.xlu0 %v859, 17
    %v868 = vpop.permute.xlu0 %867
    %v869 = vsel %vm63, %v864, %v866
    %v870 = vsel %vm63, %v866, %v868
    %873 = vst [vmem:[#allocation5] sm:$0xf] %v869
    %874 = vst [vmem:[#allocation5 + $0x8] sm:$0xf] %v870
    %v875 = vld [vmem:[#allocation3] sm:$0xff]
    %v876 = vld [vmem:[#allocation3 + $0x8] sm:$0xf]
    %v879 = vcombine.low %v875, %v875
    %v880 = vcombine.low %v876, %v876
    %881 = vrot.lane.b32.xlu0 %v879, 16
    %v882 = vpop.permute.xlu0 %881
    %883 = vrot.lane.b32.xlu0 %v875, 16
    %v884 = vpop.permute.xlu0 %883
    %885 = vrot.lane.b32.xlu0 %v880, 16
    %v886 = vpop.permute.xlu0 %885
    %v887 = vsel %vm245, %v882, %v884
    %v888 = vsel %vm245, %v884, %v886
    %891 = vst [vmem:[#allocation5] sm:$0xf0] %v887
    %892 = vst [vmem:[#allocation5 + $0x8] sm:$0xf0] %v888
    %v893 = vld [vmem:[#allocation3] sm:$0xff]
    %v894 = vld [vmem:[#allocation3 + $0x8] sm:$0xf]
    %v895 = vcombine.low %v259, %v263
    %896 = vrot.lane.b32.xlu0 %v895, 113
    %v897 = vpop.permute.xlu0 %896
    %v898 = vrot.slane %v897, 4
    %v899 = vsel %vm268, %v898, %v897
    %v902 = vmul.f32 %v893, %v899
    %v903 = vmul.f32 %v894, %v898
    %v906 = vcombine.high %v902, %v902
    %907 = vrot.lane.b32.xlu0 %v902, 15
    %v908 = vpop.permute.xlu0 %907
    %909 = vrot.lane.b32.xlu0 %v906, 15
    %v910 = vpop.permute.xlu0 %909
    %911 = vrot.lane.b32.xlu0 %v903, 15
    %v912 = vpop.permute.xlu0 %911
    %v913 = vsel %vm285, %v908, %v910
    %v914 = vsel %vm285, %v910, %v912
    %917 = vst [vmem:[#allocation5 + $0x20] sm:$0xf] %v913
    %918 = vst [vmem:[#allocation5 + $0x28] sm:$0xf] %v914
    %v919 = vld [vmem:[#allocation3] sm:$0xff]
    %v920 = vld [vmem:[#allocation3 + $0x8] sm:$0xf]
    %921 = vrot.lane.b32.xlu0 %v851, 127
    %v922 = vpop.permute.xlu0 %921
    %v923 = vrot.slane %v922, 4
    %v924 = vsel %vm299, %v923, %v922
    %v927 = vmul.f32 %v919, %v924
    %v928 = vmul.f32 %v920, %v923
    %v931 = vcombine.low %v927, %v927
    %v932 = vcombine.low %v928, %v928
    %933 = vrot.lane.b32.xlu0 %v931, 1
    %v934 = vpop.permute.xlu0 %933
    %935 = vrot.lane.b32.xlu0 %v927, 1
    %v936 = vpop.permute.xlu0 %935
    %937 = vrot.lane.b32.xlu0 %v932, 1
    %v938 = vpop.permute.xlu0 %937
    %v939 = vsel %vm316, %v934, %v936
    %v940 = vsel %vm316, %v936, %v938
    %943 = vst [vmem:[#allocation5 + $0x20] sm:$0xf0] %v939
    %944 = vst [vmem:[#allocation5 + $0x28] sm:$0xf0] %v940
    %v945 = vld [vmem:[#allocation3 + $0x4] sm:$0xff]
    %v947 = vcombine.high %v945, %v945
    %949 = vst [vmem:[#allocation5 + $0x40] sm:$0xf] %v945
    %950 = vst [vmem:[#allocation5 + $0x48] sm:$0xf] %v947
    %v951 = vld [vmem:[#allocation3 + $0x4] sm:$0xff]
    %v952 = vld [vmem:[#allocation3 + $0xc] sm:$0xf]
    %953 = vrot.lane.b32.xlu0 %v895, 1
    %v954 = vpop.permute.xlu0 %953
    %v955 = vrot.slane %v954, 4
    %v956 = vsel %vm316, %v955, %v954
    %v959 = vmul.f32 %v951, %v956
    %v960 = vmul.f32 %v952, %v955
    %v963 = vcombine.low %v959, %v959
    %v964 = vcombine.low %v960, %v960
    %965 = vrot.lane.b32.xlu0 %v963, 127
    %v966 = vpop.permute.xlu0 %965
    %967 = vrot.lane.b32.xlu0 %v959, 127
    %v968 = vpop.permute.xlu0 %967
    %969 = vrot.lane.b32.xlu0 %v964, 127
    %v970 = vpop.permute.xlu0 %969
    %v971 = vsel %vm299, %v966, %v968
    %v972 = vsel %vm299, %v968, %v970
    %975 = vst [vmem:[#allocation5 + $0x40] sm:$0xf0] %v971
    %976 = vst [vmem:[#allocation5 + $0x48] sm:$0xf0] %v972
    %v977 = vld [vmem:[#allocation3 + $0x4] sm:$0xff]
    %v978 = vld [vmem:[#allocation3 + $0xc] sm:$0xf]
    %979 = vrot.lane.b32.xlu0 %v851, 15
    %v980 = vpop.permute.xlu0 %979
    %v981 = vrot.slane %v980, 4
    %v982 = vsel %vm285, %v981, %v980
    %v985 = vmul.f32 %v977, %v982
    %v986 = vmul.f32 %v978, %v981
    %v989 = vcombine.high %v985, %v985
    %990 = vrot.lane.b32.xlu0 %v985, 113
    %v991 = vpop.permute.xlu0 %990
    %992 = vrot.lane.b32.xlu0 %v989, 113
    %v993 = vpop.permute.xlu0 %992
    %994 = vrot.lane.b32.xlu0 %v986, 113
    %v995 = vpop.permute.xlu0 %994
    %v996 = vsel %vm268, %v991, %v993
    %v997 = vsel %vm268, %v993, %v995
    %1000 = vst [vmem:[#allocation5 + $0x60] sm:$0xf] %v996
    %1001 = vst [vmem:[#allocation5 + $0x68] sm:$0xf] %v997
    %v1002 = vld [vmem:[#allocation3 + $0x4] sm:$0xff]
    %v1003 = vld [vmem:[#allocation3 + $0xc] sm:$0xf]
    %v1006 = vcombine.low %v1002, %v1002
    %v1007 = vcombine.low %v1003, %v1003
    %1008 = vrot.lane.b32.xlu0 %v1006, 112
    %v1009 = vpop.permute.xlu0 %1008
    %1010 = vrot.lane.b32.xlu0 %v1002, 112
    %v1011 = vpop.permute.xlu0 %1010
    %1012 = vrot.lane.b32.xlu0 %v1007, 112
    %v1013 = vpop.permute.xlu0 %1012
    %v1014 = vsel %vm397, %v1009, %v1011
    %v1015 = vsel %vm397, %v1011, %v1013
    %1018 = vst [vmem:[#allocation5 + $0x60] sm:$0xf0] %v1014
    %1019 = vst [vmem:[#allocation5 + $0x68] sm:$0xf0] %v1015
    %v1020 = vld [vmem:[#allocation3 + $0x4] sm:$0xff]
    %v1021 = vld [vmem:[#allocation3 + $0xc] sm:$0xf]
    %1022 = vrot.lane.b32.xlu0 %v895, 17
    %v1023 = vpop.permute.xlu0 %1022
    %v1024 = vrot.slane %v1023, 4
    %v1025 = vsel %vm63, %v1024, %v1023
    %v1028 = vmul.f32 %v1020, %v1025
    %v1029 = vmul.f32 %v1021, %v1024
    %v1032 = vcombine.high %v1028, %v1028
    %1033 = vrot.lane.b32.xlu0 %v1028, 111
    %v1034 = vpop.permute.xlu0 %1033
    %1035 = vrot.lane.b32.xlu0 %v1032, 111
    %v1036 = vpop.permute.xlu0 %1035
    %1037 = vrot.lane.b32.xlu0 %v1029, 111
    %v1038 = vpop.permute.xlu0 %1037
    %v1039 = vsel %vm210, %v1034, %v1036
    %v1040 = vsel %vm210, %v1036, %v1038
    %1043 = vst [vmem:[#allocation5 + $0x80] sm:$0xf] %v1039
    %1044 = vst [vmem:[#allocation5 + $0x88] sm:$0xf] %v1040
    %v1045 = vld [vmem:[%s72] sm:$0xff]
    %v1046 = vld [vmem:[%s72 + $0x8] sm:$0xf]
    %v1047 = vmul.f32 %v1045, %v855
    %v1048 = vmul.f32 %v1046, %v854
    %v1051 = vcombine.high %v1047, %v1047
    %1052 = vrot.lane.b32.xlu0 %v1047, 17
    %v1053 = vpop.permute.xlu0 %1052
    %1054 = vrot.lane.b32.xlu0 %v1051, 17
    %v1055 = vpop.permute.xlu0 %1054
    %1056 = vrot.lane.b32.xlu0 %v1048, 17
    %v1057 = vpop.permute.xlu0 %1056
    %v1058 = vsel %vm63, %v1053, %v1055
    %v1059 = vsel %vm63, %v1055, %v1057
    %1062 = vst [vmem:[#allocation5 + $0x10] sm:$0xf] %v1058
    %1063 = vst [vmem:[#allocation5 + $0x18] sm:$0xf] %v1059
    %v1064 = vld [vmem:[%s72] sm:$0xff]
    %v1065 = vld [vmem:[%s72 + $0x8] sm:$0xf]
    %v1068 = vcombine.low %v1064, %v1064
    %v1069 = vcombine.low %v1065, %v1065
    %1070 = vrot.lane.b32.xlu0 %v1068, 16
    %v1071 = vpop.permute.xlu0 %1070
    %1072 = vrot.lane.b32.xlu0 %v1064, 16
    %v1073 = vpop.permute.xlu0 %1072
    %1074 = vrot.lane.b32.xlu0 %v1069, 16
    %v1075 = vpop.permute.xlu0 %1074
    %v1076 = vsel %vm245, %v1071, %v1073
    %v1077 = vsel %vm245, %v1073, %v1075
    %1080 = vst [vmem:[#allocation5 + $0x10] sm:$0xf0] %v1076
    %1081 = vst [vmem:[#allocation5 + $0x18] sm:$0xf0] %v1077
    %v1082 = vld [vmem:[%s72] sm:$0xff]
    %v1083 = vld [vmem:[%s72 + $0x8] sm:$0xf]
    %v1084 = vmul.f32 %v1082, %v899
    %v1085 = vmul.f32 %v1083, %v898
    %v1088 = vcombine.high %v1084, %v1084
    %1089 = vrot.lane.b32.xlu0 %v1084, 15
    %v1090 = vpop.permute.xlu0 %1089
    %1091 = vrot.lane.b32.xlu0 %v1088, 15
    %v1092 = vpop.permute.xlu0 %1091
    %1093 = vrot.lane.b32.xlu0 %v1085, 15
    %v1094 = vpop.permute.xlu0 %1093
    %v1095 = vsel %vm285, %v1090, %v1092
    %v1096 = vsel %vm285, %v1092, %v1094
    %1099 = vst [vmem:[#allocation5 + $0x30] sm:$0xf] %v1095
    %1100 = vst [vmem:[#allocation5 + $0x38] sm:$0xf] %v1096
    %v1101 = vld [vmem:[%s72] sm:$0xff]
    %v1102 = vld [vmem:[%s72 + $0x8] sm:$0xf]
    %v1103 = vmul.f32 %v1101, %v924
    %v1104 = vmul.f32 %v1102, %v923
    %v1107 = vcombine.low %v1103, %v1103
    %v1108 = vcombine.low %v1104, %v1104
    %1109 = vrot.lane.b32.xlu0 %v1107, 1
    %v1110 = vpop.permute.xlu0 %1109
    %1111 = vrot.lane.b32.xlu0 %v1103, 1
    %v1112 = vpop.permute.xlu0 %1111
    %1113 = vrot.lane.b32.xlu0 %v1108, 1
    %v1114 = vpop.permute.xlu0 %1113
    %v1115 = vsel %vm316, %v1110, %v1112
    %v1116 = vsel %vm316, %v1112, %v1114
    %1119 = vst [vmem:[#allocation5 + $0x30] sm:$0xf0] %v1115
    %1120 = vst [vmem:[#allocation5 + $0x38] sm:$0xf0] %v1116
    %v1121 = vld [vmem:[%s72 + $0x4] sm:$0xff]
    %v1123 = vcombine.high %v1121, %v1121
    %1125 = vst [vmem:[#allocation5 + $0x50] sm:$0xf] %v1121
    %1126 = vst [vmem:[#allocation5 + $0x58] sm:$0xf] %v1123
    %v1127 = vld [vmem:[%s72 + $0x4] sm:$0xff]
    %v1128 = vld [vmem:[%s72 + $0xc] sm:$0xf]
    %v1129 = vmul.f32 %v1127, %v956
    %v1130 = vmul.f32 %v1128, %v955
    %v1133 = vcombine.low %v1129, %v1129
    %v1134 = vcombine.low %v1130, %v1130
    %1135 = vrot.lane.b32.xlu0 %v1133, 127
    %v1136 = vpop.permute.xlu0 %1135
    %1137 = vrot.lane.b32.xlu0 %v1129, 127
    %v1138 = vpop.permute.xlu0 %1137
    %1139 = vrot.lane.b32.xlu0 %v1134, 127
    %v1140 = vpop.permute.xlu0 %1139
    %v1141 = vsel %vm299, %v1136, %v1138
    %v1142 = vsel %vm299, %v1138, %v1140
    %1145 = vst [vmem:[#allocation5 + $0x50] sm:$0xf0] %v1141
    %1146 = vst [vmem:[#allocation5 + $0x58] sm:$0xf0] %v1142
    %v1147 = vld [vmem:[%s72 + $0x4] sm:$0xff]
    %v1148 = vld [vmem:[%s72 + $0xc] sm:$0xf]
    %v1149 = vmul.f32 %v1147, %v982
    %v1150 = vmul.f32 %v1148, %v981
    %v1153 = vcombine.high %v1149, %v1149
    %1154 = vrot.lane.b32.xlu0 %v1149, 113
    %v1155 = vpop.permute.xlu0 %1154
    %1156 = vrot.lane.b32.xlu0 %v1153, 113
    %v1157 = vpop.permute.xlu0 %1156
    %1158 = vrot.lane.b32.xlu0 %v1150, 113
    %v1159 = vpop.permute.xlu0 %1158
    %v1160 = vsel %vm268, %v1155, %v1157
    %v1161 = vsel %vm268, %v1157, %v1159
    %1164 = vst [vmem:[#allocation5 + $0x70] sm:$0xf] %v1160
    %1165 = vst [vmem:[#allocation5 + $0x78] sm:$0xf] %v1161
    %v1166 = vld [vmem:[%s72 + $0x4] sm:$0xff]
    %v1167 = vld [vmem:[%s72 + $0xc] sm:$0xf]
    %v1170 = vcombine.low %v1166, %v1166
    %v1171 = vcombine.low %v1167, %v1167
    %1172 = vrot.lane.b32.xlu0 %v1170, 112
    %v1173 = vpop.permute.xlu0 %1172
    %1174 = vrot.lane.b32.xlu0 %v1166, 112
    %v1175 = vpop.permute.xlu0 %1174
    %1176 = vrot.lane.b32.xlu0 %v1171, 112
    %v1177 = vpop.permute.xlu0 %1176
    %v1178 = vsel %vm397, %v1173, %v1175
    %v1179 = vsel %vm397, %v1175, %v1177
    %1182 = vst [vmem:[#allocation5 + $0x70] sm:$0xf0] %v1178
    %1183 = vst [vmem:[#allocation5 + $0x78] sm:$0xf0] %v1179
    %v1184 = vld [vmem:[%s72 + $0x4] sm:$0xff]
    %v1185 = vld [vmem:[%s72 + $0xc] sm:$0xf]
    %v1186 = vmul.f32 %v1184, %v1025
    %v1187 = vmul.f32 %v1185, %v1024
    %v1190 = vcombine.high %v1186, %v1186
    %1191 = vrot.lane.b32.xlu0 %v1186, 111
    %v1192 = vpop.permute.xlu0 %1191
    %1193 = vrot.lane.b32.xlu0 %v1190, 111
    %v1194 = vpop.permute.xlu0 %1193
    %1195 = vrot.lane.b32.xlu0 %v1187, 111
    %v1196 = vpop.permute.xlu0 %1195
    %v1197 = vsel %vm210, %v1192, %v1194
    %v1198 = vsel %vm210, %v1194, %v1196
    %1201 = vst [vmem:[#allocation5 + $0x90] sm:$0xf] %v1197
    %1202 = vst [vmem:[#allocation5 + $0x98] sm:$0xf] %v1198
    %v1203 = vld [vmem:[%s6] sm:$0xf]
    %v1204 = vld [vmem:[#allocation5] sm:$0xff]
    %v1205 = vld [vmem:[#allocation5 + $0x8] sm:$0xff]
    %v1206 = vld [vmem:[#allocation5 + $0x10] sm:$0xff]
    %v1207 = vld [vmem:[#allocation5 + $0x18] sm:$0xff]
    %v1208 = vld [vmem:[#allocation5 + $0x20] sm:$0xff]
    %v1209 = vld [vmem:[#allocation5 + $0x28] sm:$0xff]
    %v1210 = vld [vmem:[#allocation5 + $0x30] sm:$0xff]
    %v1211 = vld [vmem:[#allocation5 + $0x38] sm:$0xff]
    %v1212 = vld [vmem:[#allocation5 + $0x40] sm:$0xff]
    %v1213 = vld [vmem:[#allocation5 + $0x48] sm:$0xff]
    %v1214 = vld [vmem:[#allocation5 + $0x50] sm:$0xff]
    %v1215 = vld [vmem:[#allocation5 + $0x58] sm:$0xff]
    %v1216 = vld [vmem:[#allocation5 + $0x60] sm:$0xff]
    %v1217 = vld [vmem:[#allocation5 + $0x68] sm:$0xff]
    %v1218 = vld [vmem:[#allocation5 + $0x70] sm:$0xff]
    %v1219 = vld [vmem:[#allocation5 + $0x78] sm:$0xff]
    %v1220 = vld [vmem:[#allocation5 + $0x80] sm:$0xf]
    %v1221 = vld [vmem:[#allocation5 + $0x88] sm:$0xf]
    %v1222 = vld [vmem:[#allocation5 + $0x90] sm:$0xf]
    %v1223 = vld [vmem:[#allocation5 + $0x98] sm:$0xf]
    %v1224 = vld [vmem:[%s7] sm:$0xf]
    %1226 = vset.pattern.permute.xlu0 0
    %1227 = vperm.xlu0 %1226, %v1224
    %v1228 = vpop.permute.xlu0 %1227
    %vm1230 = vcmask 293888
    %v1232 = vsel %vm1230, %v1203, 0
    %v1235 = vsel %vm180, %v1220, 0
    %v1238 = vsel %vm180, %v1221, 0
    %v1241 = vsel %vm180, %v1222, 0
    %v1244 = vsel %vm180, %v1223, 0
    %1246 = vmatprep.subr.mxu0 %v1205
    %1247 = vmatpush1.msra.mxu0 %v1204
    %1248 = vmatprep.subr.mxu0 %v1209
    %1249 = vmatpush1.msra.mxu0 %v1208
    %1250 = vmatprep.subr.mxu0 %v1213
    %1251 = vmatpush1.msra.mxu0 %v1212
    %1252 = vmatprep.subr.mxu0 %v1217
    %1253 = vmatpush1.msra.mxu0 %v1216
    %1254 = vmatprep.subr.mxu0 %v1238
    %1255 = vmatpush1.msra.mxu0 %v1235
    %1256 = vmatprep.subr.mxu0 0.0
    %1257 = vmatpush1.msra.mxu0 0.0
    %1258 = vmatprep.subr.mxu0 0.0
    %1259 = vmatpush1.msra.mxu0 0.0
    %1260 = vmatprep.subr.mxu0 0.0
    %1261 = vmatpush1.msra.mxu0 0.0
    %1262 = vmatprep.subr.mxu0 0.0
    %1263 = vmatpush1.msra.mxu0 0.0
    %1264 = vmatprep.subr.mxu0 0.0
    %1265 = vmatpush1.msra.mxu0 0.0
    %1266 = vmatprep.subr.mxu0 0.0
    %1267 = vmatpush1.msra.mxu0 0.0
    %1268 = vmatprep.subr.mxu0 0.0
    %1269 = vmatpush1.msra.mxu0 0.0
    %1270 = vmatprep.subr.mxu0 0.0
    %1271 = vmatpush1.msra.mxu0 0.0
    %1272 = vmatprep.subr.mxu0 0.0
    %1273 = vmatpush1.msra.mxu0 0.0
    %1274 = vmatprep.subr.mxu0 0.0
    %1275 = vmatpush1.msra.mxu0 0.0
    %1276 = vmatprep.subr.mxu0 0.0
    %1277 = vmatpush1.msra.mxu0 0.0
    %1278 = vmatprep.subr.mxu0 0.0
    %1279 = vmatpush1.msra.mxu0 0.0
    %1280 = vmatprep.subr.mxu0 0.0
    %1281 = vmatpush1.msra.mxu0 0.0
    %1282 = vmatprep.subr.mxu0 0.0
    %1283 = vmatpush1.msra.mxu0 0.0
    %1284 = vmatprep.subr.mxu0 0.0
    %1285 = vmatpush1.msra.mxu0 0.0
    %1286 = vmatprep.subr.mxu0 0.0
    %1287 = vmatpush1.msra.mxu0 0.0
    %1288 = vmatprep.subr.mxu0 0.0
    %1289 = vmatpush1.msra.mxu0 0.0
    %1290 = vmatprep.subr.mxu0 0.0
    %1291 = vmatpush1.msra.mxu0 0.0
    %1292 = vmatprep.subr.mxu0 0.0
    %1293 = vmatpush1.msra.mxu0 0.0
    %1294 = vmatprep.subr.mxu0 0.0
    %1295 = vmatpush1.msra.mxu0 0.0
    %1296 = vmatprep.subr.mxu0 0.0
    %1297 = vmatpush1.msra.mxu0 0.0
    %1298 = vmatprep.subr.mxu0 0.0
    %1299 = vmatpush1.msra.mxu0 0.0
    %1300 = vmatprep.subr.mxu0 0.0
    %1301 = vmatpush1.msra.mxu0 0.0
    %1302 = vmatprep.subr.mxu0 0.0
    %1303 = vmatpush1.msra.mxu0 0.0
    %1304 = vmatprep.subr.mxu0 0.0
    %1305 = vmatpush1.msra.mxu0 0.0
    %1306 = vmatprep.subr.mxu0 0.0
    %1307 = vmatpush1.msra.mxu0 0.0
    %1308 = vmatprep.subr.mxu0 0.0
    %1309 = vmatpush1.msra.mxu0 0.0
    %1310 = vmatprep.mubr.f32.mxu0 0.0
    %1311 = vmatmul.mubr.f32.gmra.mrb[0].mxu0 %v1232
    %v1312 = vpop.f32.mrb[0].mxu0
    %v1313 = vadd.f32 %v1228, %v1312
    %v1314 = vpop.f32.mrb[0].mxu0
    %v1315 = vadd.f32 %v1228, %v1314
    %1316 = vdwg.mxu0
    %1317 = vmatprep.subr.mxu0 %v1207
    %1318 = vmatpush1.msra.mxu0 %v1206
    %1319 = vmatprep.subr.mxu0 %v1211
    %1320 = vmatpush1.msra.mxu0 %v1210
    %1321 = vmatprep.subr.mxu0 %v1215
    %1322 = vmatpush1.msra.mxu0 %v1214
    %1323 = vmatprep.subr.mxu0 %v1219
    %1324 = vmatpush1.msra.mxu0 %v1218
    %1325 = vmatprep.subr.mxu0 %v1244
    %1326 = vmatpush1.msra.mxu0 %v1241
    %1327 = vmatprep.subr.mxu0 0.0
    %1328 = vmatpush1.msra.mxu0 0.0
    %1329 = vmatprep.subr.mxu0 0.0
    %1330 = vmatpush1.msra.mxu0 0.0
    %1331 = vmatprep.subr.mxu0 0.0
    %1332 = vmatpush1.msra.mxu0 0.0
    %1333 = vmatprep.subr.mxu0 0.0
    %1334 = vmatpush1.msra.mxu0 0.0
    %1335 = vmatprep.subr.mxu0 0.0
    %1336 = vmatpush1.msra.mxu0 0.0
    %1337 = vmatprep.subr.mxu0 0.0
    %1338 = vmatpush1.msra.mxu0 0.0
    %1339 = vmatprep.subr.mxu0 0.0
    %1340 = vmatpush1.msra.mxu0 0.0
    %1341 = vmatprep.subr.mxu0 0.0
    %1342 = vmatpush1.msra.mxu0 0.0
    %1343 = vmatprep.subr.mxu0 0.0
    %1344 = vmatpush1.msra.mxu0 0.0
    %1345 = vmatprep.subr.mxu0 0.0
    %1346 = vmatpush1.msra.mxu0 0.0
    %1347 = vmatprep.subr.mxu0 0.0
    %1348 = vmatpush1.msra.mxu0 0.0
    %1349 = vmatprep.subr.mxu0 0.0
    %1350 = vmatpush1.msra.mxu0 0.0
    %1351 = vmatprep.subr.mxu0 0.0
    %1352 = vmatpush1.msra.mxu0 0.0
    %1353 = vmatprep.subr.mxu0 0.0
    %1354 = vmatpush1.msra.mxu0 0.0
    %1355 = vmatprep.subr.mxu0 0.0
    %1356 = vmatpush1.msra.mxu0 0.0
    %1357 = vmatprep.subr.mxu0 0.0
    %1358 = vmatpush1.msra.mxu0 0.0
    %1359 = vmatprep.subr.mxu0 0.0
    %1360 = vmatpush1.msra.mxu0 0.0
    %1361 = vmatprep.subr.mxu0 0.0
    %1362 = vmatpush1.msra.mxu0 0.0
    %1363 = vmatprep.subr.mxu0 0.0
    %1364 = vmatpush1.msra.mxu0 0.0
    %1365 = vmatprep.subr.mxu0 0.0
    %1366 = vmatpush1.msra.mxu0 0.0
    %1367 = vmatprep.subr.mxu0 0.0
    %1368 = vmatpush1.msra.mxu0 0.0
    %1369 = vmatprep.subr.mxu0 0.0
    %1370 = vmatpush1.msra.mxu0 0.0
    %1371 = vmatprep.subr.mxu0 0.0
    %1372 = vmatpush1.msra.mxu0 0.0
    %1373 = vmatprep.subr.mxu0 0.0
    %1374 = vmatpush1.msra.mxu0 0.0
    %1375 = vmatprep.subr.mxu0 0.0
    %1376 = vmatpush1.msra.mxu0 0.0
    %1377 = vmatprep.subr.mxu0 0.0
    %1378 = vmatpush1.msra.mxu0 0.0
    %1379 = vmatprep.subr.mxu0 0.0
    %1380 = vmatpush1.msra.mxu0 0.0
    %1381 = vmatprep.mubr.f32.mxu0 0.0
    %1382 = vmatmul.mubr.f32.gmra.mrb[0].mxu0 %v1232
    %v1383 = vpop.f32.mrb[0].mxu0
    %v1384 = vadd.f32 %v1228, %v1383
    %v1385 = vpop.f32.mrb[0].mxu0
    %v1386 = vadd.f32 %v1228, %v1385
    %1387 = vdwg.mxu0
    %v1388 = vsel %vm180, %v1313, 0.0
    %v1389 = vsel %vm180, %v1315, 0.0
    %v1390 = vadd.f32 %v1388, %v1389
    %1391 = vadd.xlane.f32.xlu0 %v1390
    %v1392 = vpop.xlane.xlu0 %1391
    %v1393 = vmul.f32 %v1392, %v793
    %v1394 = vmul.f32 %v1313, %v1313
    %v1395 = vmul.f32 %v1315, %v1315
    %v1396 = vsel %vm180, %v1394, 0.0
    %v1397 = vsel %vm180, %v1395, 0.0
    %v1398 = vadd.f32 %v1396, %v1397
    %1399 = vadd.xlane.f32.xlu0 %v1398
    %v1400 = vpop.xlane.xlu0 %1399
    %v1401 = vmul.f32 %v1400, %v793
    %v1402 = vmul.f32 %v1393, %v1393
    %v1403 = vsub.f32 %v1401, %v1402
    %v1404 = vmax.f32 %v1403, 0.0
    %v1405 = vsub.f32 %v1313, %v1393
    %v1406 = vsub.f32 %v1315, %v1393
    %v1407 = vadd.f32 %v1404, 1e-05
    %v1408 = vrsqrt.pop %v1407
    %v1409 = vmul.f32 %v1405, %v1408
    %v1410 = vmul.f32 %v1406, %v1408
    %v1411 = vmax.f32 %v1409, 0.0
    %v1412 = vmax.f32 %v1410, 0.0
    %v1413 = vsel %vm180, %v1384, 0.0
    %v1414 = vsel %vm180, %v1386, 0.0
    %v1415 = vadd.f32 %v1413, %v1414
    %1416 = vadd.xlane.f32.xlu0 %v1415
    %v1417 = vpop.xlane.xlu0 %1416
    %v1418 = vmul.f32 %v1417, %v793
    %v1419 = vmul.f32 %v1384, %v1384
    %v1420 = vmul.f32 %v1386, %v1386
    %v1421 = vsel %vm180, %v1419, 0.0
    %v1422 = vsel %vm180, %v1420, 0.0
    %v1423 = vadd.f32 %v1421, %v1422
    %1424 = vadd.xlane.f32.xlu0 %v1423
    %v1425 = vpop.xlane.xlu0 %1424
    %v1426 = vmul.f32 %v1425, %v793
    %v1427 = vmul.f32 %v1418, %v1418
    %v1428 = vsub.f32 %v1426, %v1427
    %v1429 = vmax.f32 %v1428, 0.0
    %v1430 = vsub.f32 %v1384, %v1418
    %v1431 = vsub.f32 %v1386, %v1418
    %v1432 = vadd.f32 %v1429, 1e-05
    %v1433 = vrsqrt.pop %v1432
    %v1434 = vmul.f32 %v1430, %v1433
    %v1435 = vmul.f32 %v1431, %v1433
    %v1436 = vmax.f32 %v1434, 0.0
    %v1437 = vmax.f32 %v1435, 0.0
    %v1440 = vcombine.low %v1411, %v1412
    %1442 = vst [vmem:[#allocation11] sm:$0xff] %v1440
    %v1445 = vcombine.low %v1436, %v1437
    %s1447 = scalar_lea.vmem [#allocation11], 8
    %1448 = vst [vmem:[%s1447] sm:$0xff] %v1445
    // Predicated region
    $region42: #{tpu_custom_call.1} parent=1 // pred_check
      _
    $region43: #{tpu_custom_call.1} parent=1 // pred_check_branch
      %1450 = sbr.rel (0) target = $region45
    $region44: #{tpu_custom_call.1} parent=1 // pred_region
      %s1452 = ssub.s32 256, 256
      %1453 = vsyncadd [#allocation8], %s1452
      %s1454 = sshll.u32 [#allocation11], 4
      %s1455 = int_to_ptr.vmem [resolvable:$true] %s1454
      %1460 = dma.vmem_to_hbm [thread:$0]  %s1455, 256, %s8, [#allocation8], 128, 128, 8
    $region45: #{tpu_custom_call.1} parent=1 // pred_fallthru
      _
    // Predicated region
    $region46: #{tpu_custom_call.1} parent=1 // pred_check
      _
    $region47: #{tpu_custom_call.1} parent=1 // pred_check_branch
      %1462 = sbr.rel (0) target = $region49
    $region48: #{tpu_custom_call.1} parent=1 // pred_region
      %1463 = dma.done [#allocation8], 256
    $region49: #{tpu_custom_call.1} parent=1 // pred_fallthru
      _
    %1464 = vsyncpa [#allocation7], 1
    %1465 = vsyncpa [#allocation10], 1
    %1466 = vsyncpa [#allocation8], 1

</llo_original>
